<compile_context>
chip_gen: v6e
topology: v6e:2x2x1
jax: 0.10.0
libtpu: 0.0.40
codegen_flags: <defaults>
</compile_context>

<pallas_src>
import functools

import jax
import jax.numpy as jnp
from jax.experimental import pallas as pl
from jax.experimental.pallas import tpu as pltpu

C_IN = 3             # RGB frames
C_HID = 16           # hidden channels of the synthetic flow head
C_FLOW = 2           # (u, v) flow
K1 = 9 * 2 * C_IN    # conv1 contraction rows: taps x pair channels = 54
K2 = 9 * C_HID       # conv2 contraction rows: taps x hidden channels = 144


def _flow_batch_kernel(vid_ref, w1_ref, b1_ref, w2_ref, b2_ref, out_ref,
                       *, T, Wp, L1, L2):
    """All T-1 frame-pair flows for one batch element (two MXU dots total).

    vid_ref : (T*C_IN, Lf) bf16  raw [0,1] frames (0.5-padded), each frame
                                 flattened (C, Hx*Wp).  Normalization folded
                                 into w1/b1 (coupled to the 0.5 pad value).
    w1_ref  : (C_HID, 54)  bf16  2*conv1 weights, cols = (tap, pair-channel).
    b1_ref  : (C_HID, 1)   f32   conv1 bias adjusted for the folded normalize.
    w2_ref  : (C_FLOW, 144) bf16 conv2 weights, cols = (tap, hidden-channel).
    b2_ref  : (C_FLOW, 1)  f32
    out_ref : (C_FLOW, (T-1)*L2) f32  lane-dense flow slab, pair-major cols.
    """
    PR = T - 1
    offs = [dy * Wp + dx for dy in range(3) for dx in range(3)]

    x = vid_ref[...]                                    # (T*C_IN, Lf) bf16

    # Hoisted tap shifts: each lane-shifted view of the whole T-frame slab is
    # built exactly once (interior frames are shared by two pairs).
    shifted = [x[:, off:off + L1] for off in offs]      # 9 x (T*C_IN, L1)

    # conv1 RHS: rows = (tap, pair-channel) = 54, cols = (pair, pixel).
    # Pair blocks sit at lane offsets t*L1 (L1 % 128 == 0 -> aligned concat).
    rhs1 = jnp.concatenate(
        [jnp.concatenate([s[t * C_IN:(t + 2) * C_IN, :] for s in shifted],
                         axis=0)
         for t in range(PR)], axis=1)                   # (54, PR*L1) bf16

    h = jnp.dot(w1_ref[...], rhs1, preferred_element_type=jnp.float32)
    h = jnp.maximum(h + b1_ref[...], 0.0)               # (C_HID, PR*L1) f32
    hb = h.astype(jnp.bfloat16)

    # conv2 RHS: rows = (tap, hidden-channel) = 144, cols = (pair, pixel).
    rhs2 = jnp.concatenate(
        [jnp.concatenate([hb[:, t * L1 + off:t * L1 + off + L2]
                          for off in offs], axis=0)
         for t in range(PR)], axis=1)                   # (144, PR*L2) bf16

    o = jnp.dot(w2_ref[...], rhs2, preferred_element_type=jnp.float32)

    # Single lane-dense store: (2, (T-1)*H*Wp); (T-1)*L2 is a multiple of 128
    # so there are no masked tail vregs.  NOTE: columns c in [W, Wp) of each
    # output row contain row-wrapped tap garbage; the wrapper slices them off
    # — never consume this slab without that slice.
    out_ref[...] = (o + b2_ref[...]).astype(out_ref.dtype)


def eval_flow(vid, w1, b1, w2, b2):
    """vid: (N, 3, T, H, W) in [0, 1].  Returns flow (N, 2, T-1, H, W) f32."""
    N, C, T, H, W = vid.shape
    assert C == C_IN and T >= 2
    PR = T - 1

    # ---- flattened-space geometry (static Python) --------------------------
    # Wp >= W+4 (2px border each side) such that the per-pair flow block
    # L2 = H*Wp is a multiple of 128 (lane-dense output & dot extents).
    Wp = W + 4
    while (H * Wp) % 128:
        Wp += 1
    L2 = H * Wp                                   # conv2 / final output domain
    # conv2 reads conv1 positions up to L2-1 + 2*Wp + 2; round up to 128.
    L1 = -(-(L2 + 2 * Wp + 2) // 128) * 128       # conv1 output domain
    # conv1 reads input positions up to L1-1 + 2*Wp + 2; whole padded rows.
    Hx = -(-(L1 + 2 * Wp + 2) // Wp)
    Lf = Hx * Wp                                  # flattened padded frame len

    # ---- video: (N,C,T,H,W) -> (N, T*C, Hx*Wp), bf16, padded with 0.5 ------
    # Pad value 0.5 becomes exactly 0 after the (x-0.5)/0.5 normalization that
    # is folded into conv1 below (the two are coupled).  Cast to bf16 BEFORE
    # padding so the wrapper-side padded copy is half the HBM traffic of f32.
    v = jnp.transpose(vid, (0, 2, 1, 3, 4)).astype(jnp.bfloat16)
    v = jnp.pad(v, ((0, 0), (0, 0), (0, 0), (2, Hx - 2 - H), (2, Wp - 2 - W)),
                constant_values=0.5)
    v = v.reshape(N, T * C_IN, Lf)

    # ---- weights: fold normalization, stack taps along the contraction -----
    #   conv1(2x - 1) + b1  ==  (2*w1) @ x + (b1 - sum(w1))      (exact)
    w1f = w1.astype(jnp.float32)
    w1s = (2.0 * w1f).reshape(9, 2 * C_IN, C_HID)
    w1s = jnp.transpose(w1s, (2, 0, 1)).reshape(C_HID, K1).astype(jnp.bfloat16)
    b1a = (b1.astype(jnp.float32) - w1f.sum(axis=(0, 1, 2))).reshape(C_HID, 1)
    w2s = w2.astype(jnp.float32).reshape(9, C_HID, C_FLOW)
    w2s = jnp.transpose(w2s, (2, 0, 1)).reshape(C_FLOW, K2).astype(jnp.bfloat16)
    b2c = b2.astype(jnp.float32).reshape(C_FLOW, 1)

    kernel = functools.partial(_flow_batch_kernel, T=T, Wp=Wp, L1=L1, L2=L2)

    flow_flat = pl.pallas_call(
        kernel,
        out_shape=jax.ShapeDtypeStruct((N, C_FLOW, PR * L2), jnp.float32),
        grid_spec=pltpu.PrefetchScalarGridSpec(
            num_scalar_prefetch=0,
            grid=(N,),
            in_specs=[
                pl.BlockSpec((None, T * C_IN, Lf), lambda n: (n, 0, 0)),
                # Constant index_maps: weight blocks stay VMEM-resident across
                # the batch grid (no per-step re-DMA).
                pl.BlockSpec((C_HID, K1), lambda n: (0, 0)),
                pl.BlockSpec((C_HID, 1), lambda n: (0, 0)),
                pl.BlockSpec((C_FLOW, K2), lambda n: (0, 0)),
                pl.BlockSpec((C_FLOW, 1), lambda n: (0, 0)),
            ],
            out_specs=pl.BlockSpec((None, C_FLOW, PR * L2),
                                   lambda n: (n, 0, 0)),
        ),
        compiler_params=pltpu.CompilerParams(
            dimension_semantics=("parallel",),
            vmem_limit_bytes=32 * 1024 * 1024),
    )(v, w1s, b1a, w2s, b2c)

    # Pair-major lane slab -> (N, 2, T-1, H, W): drop the garbage right-pad
    # columns.  Already in torch.stack(dim=2) channel/time order: no transpose.
    return flow_flat.reshape(N, C_FLOW, PR, H, Wp)[..., :W]


def make_params(key):
    k1, k2, k3, k4 = jax.random.split(key, 4)
    w1 = jax.random.normal(k1, (3, 3, 2 * C_IN, C_HID), jnp.float32) * 0.1
    b1 = jax.random.normal(k2, (C_HID,), jnp.float32) * 0.01
    w2 = jax.random.normal(k3, (3, 3, C_HID, C_FLOW), jnp.float32) * 0.1
    b2 = jax.random.normal(k4, (C_FLOW,), jnp.float32) * 0.01
    return w1, b1, w2, b2


def _reference_flow(vid, w1, b1, w2, b2):
    """Pure-JAX f32 reference of the same synthetic flow head."""
    N, C, T, H, W = vid.shape
    v = (vid.astype(jnp.float32) - 0.5) * 2.0
    v = jnp.pad(v, ((0, 0), (0, 0), (0, 0), (2, 2), (2, 2)))
    outs = []
    for t in range(T - 1):
        x = jnp.concatenate([v[:, :, t], v[:, :, t + 1]], axis=1)
        h = jnp.zeros((N, C_HID, H + 2, W + 2), jnp.float32)
        for dy in range(3):
            for dx in range(3):
                patch = x[:, :, dy:dy + H + 2, dx:dx + W + 2]
                h = h + jnp.einsum('ncij,co->noij', patch, w1[dy, dx])
        h = jnp.maximum(h + b1[None, :, None, None], 0.0)
        o = jnp.zeros((N, C_FLOW, H, W), jnp.float32)
        for dy in range(3):
            for dx in range(3):
                patch = h[:, :, dy:dy + H, dx:dx + W]
                o = o + jnp.einsum('ncij,co->noij', patch, w2[dy, dx])
        outs.append(o + b2[None, :, None, None])
    return jnp.stack(outs, axis=2)


if __name__ == "__main__":
    key = jax.random.PRNGKey(0)
    kv, kp = jax.random.split(key)

    # Small video: batch=2, channels=3 (RGB), T=5 frames, 16x16 spatial.
    N, T, H, W = 2, 5, 16, 16
    vid = jax.random.uniform(kv, (N, C_IN, T, H, W), jnp.float32)
    w1, b1, w2, b2 = make_params(kp)

    flow = jax.jit(eval_flow)(vid, w1, b1, w2, b2)
    flow = jax.block_until_ready(flow)

    assert flow.shape == (N, C_FLOW, T - 1, H, W), flow.shape
    assert flow.dtype == jnp.float32
    assert bool(jnp.all(jnp.isfinite(flow)))

    # Correctness vs pure-JAX f32 reference (bf16 MXU operands -> loose tol).
    ref = jax.block_until_ready(_reference_flow(vid, w1, b1, w2, b2))
    max_err = float(jnp.max(jnp.abs(flow - ref)))
    assert max_err < 5e-2, f"max abs error {max_err}"

    print("KERNEL_OK")
</pallas_src>

<mosaic_0001>
module attributes {stable_mosaic.version = 11 : i64} {
  func.func @_flow_batch_kernel(%arg0: i32, %arg1: memref<1x15x576xbf16, #tpu.memory_space<vmem>>, %arg2: memref<16x54xbf16, #tpu.memory_space<vmem>>, %arg3: memref<16x1xf32, #tpu.memory_space<vmem>>, %arg4: memref<2x144xbf16, #tpu.memory_space<vmem>>, %arg5: memref<2x1xf32, #tpu.memory_space<vmem>>, %arg6: memref<1x2x1536xf32, #tpu.memory_space<vmem>>) attributes {dimension_semantics = [#tpu.dimension_semantics<parallel>], iteration_bounds = array<i64: 2>, scalar_prefetch = 0 : i64, scratch_operands = 0 : i64, tpu.core_type = #tpu.core_type<tc>, window_params = [{transform_indices = @transform_0, window_bounds = array<i64: 1, 15, 576>}, {pipeline_mode = #tpu.pipeline_mode<synchronous>, transform_indices = @transform_1, window_bounds = array<i64: 16, 54>}, {pipeline_mode = #tpu.pipeline_mode<synchronous>, transform_indices = @transform_2, window_bounds = array<i64: 16, 1>}, {pipeline_mode = #tpu.pipeline_mode<synchronous>, transform_indices = @transform_3, window_bounds = array<i64: 2, 144>}, {pipeline_mode = #tpu.pipeline_mode<synchronous>, transform_indices = @transform_4, window_bounds = array<i64: 2, 1>}, {transform_indices = @transform_5, window_bounds = array<i64: 1, 2, 1536>}]} {
    %c0 = arith.constant 0 : index
    %c0_0 = arith.constant 0 : index
    %c0_1 = arith.constant 0 : index
    %0 = vector.load %arg1[%c0, %c0_0, %c0_1] : memref<1x15x576xbf16, #tpu.memory_space<vmem>>, vector<1x15x576xbf16>
    %1 = vector.shape_cast %0 : vector<1x15x576xbf16> to vector<15x576xbf16>
    %2 = vector.extract_strided_slice %1 {offsets = [0, 0], sizes = [15, 512], strides = [1, 1]} : vector<15x576xbf16> to vector<15x512xbf16>
    %3 = vector.extract_strided_slice %1 {offsets = [0, 1], sizes = [15, 512], strides = [1, 1]} : vector<15x576xbf16> to vector<15x512xbf16>
    %4 = vector.extract_strided_slice %1 {offsets = [0, 2], sizes = [15, 512], strides = [1, 1]} : vector<15x576xbf16> to vector<15x512xbf16>
    %5 = vector.extract_strided_slice %1 {offsets = [0, 24], sizes = [15, 512], strides = [1, 1]} : vector<15x576xbf16> to vector<15x512xbf16>
    %6 = vector.extract_strided_slice %1 {offsets = [0, 25], sizes = [15, 512], strides = [1, 1]} : vector<15x576xbf16> to vector<15x512xbf16>
    %7 = vector.extract_strided_slice %1 {offsets = [0, 26], sizes = [15, 512], strides = [1, 1]} : vector<15x576xbf16> to vector<15x512xbf16>
    %8 = vector.extract_strided_slice %1 {offsets = [0, 48], sizes = [15, 512], strides = [1, 1]} : vector<15x576xbf16> to vector<15x512xbf16>
    %9 = vector.extract_strided_slice %1 {offsets = [0, 49], sizes = [15, 512], strides = [1, 1]} : vector<15x576xbf16> to vector<15x512xbf16>
    %10 = vector.extract_strided_slice %1 {offsets = [0, 50], sizes = [15, 512], strides = [1, 1]} : vector<15x576xbf16> to vector<15x512xbf16>
    %11 = vector.extract_strided_slice %2 {offsets = [0, 0], sizes = [6, 512], strides = [1, 1]} : vector<15x512xbf16> to vector<6x512xbf16>
    %12 = vector.extract_strided_slice %3 {offsets = [0, 0], sizes = [6, 512], strides = [1, 1]} : vector<15x512xbf16> to vector<6x512xbf16>
    %13 = vector.extract_strided_slice %4 {offsets = [0, 0], sizes = [6, 512], strides = [1, 1]} : vector<15x512xbf16> to vector<6x512xbf16>
    %14 = vector.extract_strided_slice %5 {offsets = [0, 0], sizes = [6, 512], strides = [1, 1]} : vector<15x512xbf16> to vector<6x512xbf16>
    %15 = vector.extract_strided_slice %6 {offsets = [0, 0], sizes = [6, 512], strides = [1, 1]} : vector<15x512xbf16> to vector<6x512xbf16>
    %16 = vector.extract_strided_slice %7 {offsets = [0, 0], sizes = [6, 512], strides = [1, 1]} : vector<15x512xbf16> to vector<6x512xbf16>
    %17 = vector.extract_strided_slice %8 {offsets = [0, 0], sizes = [6, 512], strides = [1, 1]} : vector<15x512xbf16> to vector<6x512xbf16>
    %18 = vector.extract_strided_slice %9 {offsets = [0, 0], sizes = [6, 512], strides = [1, 1]} : vector<15x512xbf16> to vector<6x512xbf16>
    %19 = vector.extract_strided_slice %10 {offsets = [0, 0], sizes = [6, 512], strides = [1, 1]} : vector<15x512xbf16> to vector<6x512xbf16>
    %20 = tpu.concatenate %11, %12, %13, %14, %15, %16, %17, %18, %19 in 0 : vector<6x512xbf16>, vector<6x512xbf16>, vector<6x512xbf16>, vector<6x512xbf16>, vector<6x512xbf16>, vector<6x512xbf16>, vector<6x512xbf16>, vector<6x512xbf16>, vector<6x512xbf16> -> vector<54x512xbf16>
    %21 = vector.extract_strided_slice %2 {offsets = [3, 0], sizes = [6, 512], strides = [1, 1]} : vector<15x512xbf16> to vector<6x512xbf16>
    %22 = vector.extract_strided_slice %3 {offsets = [3, 0], sizes = [6, 512], strides = [1, 1]} : vector<15x512xbf16> to vector<6x512xbf16>
    %23 = vector.extract_strided_slice %4 {offsets = [3, 0], sizes = [6, 512], strides = [1, 1]} : vector<15x512xbf16> to vector<6x512xbf16>
    %24 = vector.extract_strided_slice %5 {offsets = [3, 0], sizes = [6, 512], strides = [1, 1]} : vector<15x512xbf16> to vector<6x512xbf16>
    %25 = vector.extract_strided_slice %6 {offsets = [3, 0], sizes = [6, 512], strides = [1, 1]} : vector<15x512xbf16> to vector<6x512xbf16>
    %26 = vector.extract_strided_slice %7 {offsets = [3, 0], sizes = [6, 512], strides = [1, 1]} : vector<15x512xbf16> to vector<6x512xbf16>
    %27 = vector.extract_strided_slice %8 {offsets = [3, 0], sizes = [6, 512], strides = [1, 1]} : vector<15x512xbf16> to vector<6x512xbf16>
    %28 = vector.extract_strided_slice %9 {offsets = [3, 0], sizes = [6, 512], strides = [1, 1]} : vector<15x512xbf16> to vector<6x512xbf16>
    %29 = vector.extract_strided_slice %10 {offsets = [3, 0], sizes = [6, 512], strides = [1, 1]} : vector<15x512xbf16> to vector<6x512xbf16>
    %30 = tpu.concatenate %21, %22, %23, %24, %25, %26, %27, %28, %29 in 0 : vector<6x512xbf16>, vector<6x512xbf16>, vector<6x512xbf16>, vector<6x512xbf16>, vector<6x512xbf16>, vector<6x512xbf16>, vector<6x512xbf16>, vector<6x512xbf16>, vector<6x512xbf16> -> vector<54x512xbf16>
    %31 = vector.extract_strided_slice %2 {offsets = [6, 0], sizes = [6, 512], strides = [1, 1]} : vector<15x512xbf16> to vector<6x512xbf16>
    %32 = vector.extract_strided_slice %3 {offsets = [6, 0], sizes = [6, 512], strides = [1, 1]} : vector<15x512xbf16> to vector<6x512xbf16>
    %33 = vector.extract_strided_slice %4 {offsets = [6, 0], sizes = [6, 512], strides = [1, 1]} : vector<15x512xbf16> to vector<6x512xbf16>
    %34 = vector.extract_strided_slice %5 {offsets = [6, 0], sizes = [6, 512], strides = [1, 1]} : vector<15x512xbf16> to vector<6x512xbf16>
    %35 = vector.extract_strided_slice %6 {offsets = [6, 0], sizes = [6, 512], strides = [1, 1]} : vector<15x512xbf16> to vector<6x512xbf16>
    %36 = vector.extract_strided_slice %7 {offsets = [6, 0], sizes = [6, 512], strides = [1, 1]} : vector<15x512xbf16> to vector<6x512xbf16>
    %37 = vector.extract_strided_slice %8 {offsets = [6, 0], sizes = [6, 512], strides = [1, 1]} : vector<15x512xbf16> to vector<6x512xbf16>
    %38 = vector.extract_strided_slice %9 {offsets = [6, 0], sizes = [6, 512], strides = [1, 1]} : vector<15x512xbf16> to vector<6x512xbf16>
    %39 = vector.extract_strided_slice %10 {offsets = [6, 0], sizes = [6, 512], strides = [1, 1]} : vector<15x512xbf16> to vector<6x512xbf16>
    %40 = tpu.concatenate %31, %32, %33, %34, %35, %36, %37, %38, %39 in 0 : vector<6x512xbf16>, vector<6x512xbf16>, vector<6x512xbf16>, vector<6x512xbf16>, vector<6x512xbf16>, vector<6x512xbf16>, vector<6x512xbf16>, vector<6x512xbf16>, vector<6x512xbf16> -> vector<54x512xbf16>
    %41 = vector.extract_strided_slice %2 {offsets = [9, 0], sizes = [6, 512], strides = [1, 1]} : vector<15x512xbf16> to vector<6x512xbf16>
    %42 = vector.extract_strided_slice %3 {offsets = [9, 0], sizes = [6, 512], strides = [1, 1]} : vector<15x512xbf16> to vector<6x512xbf16>
    %43 = vector.extract_strided_slice %4 {offsets = [9, 0], sizes = [6, 512], strides = [1, 1]} : vector<15x512xbf16> to vector<6x512xbf16>
    %44 = vector.extract_strided_slice %5 {offsets = [9, 0], sizes = [6, 512], strides = [1, 1]} : vector<15x512xbf16> to vector<6x512xbf16>
    %45 = vector.extract_strided_slice %6 {offsets = [9, 0], sizes = [6, 512], strides = [1, 1]} : vector<15x512xbf16> to vector<6x512xbf16>
    %46 = vector.extract_strided_slice %7 {offsets = [9, 0], sizes = [6, 512], strides = [1, 1]} : vector<15x512xbf16> to vector<6x512xbf16>
    %47 = vector.extract_strided_slice %8 {offsets = [9, 0], sizes = [6, 512], strides = [1, 1]} : vector<15x512xbf16> to vector<6x512xbf16>
    %48 = vector.extract_strided_slice %9 {offsets = [9, 0], sizes = [6, 512], strides = [1, 1]} : vector<15x512xbf16> to vector<6x512xbf16>
    %49 = vector.extract_strided_slice %10 {offsets = [9, 0], sizes = [6, 512], strides = [1, 1]} : vector<15x512xbf16> to vector<6x512xbf16>
    %50 = tpu.concatenate %41, %42, %43, %44, %45, %46, %47, %48, %49 in 0 : vector<6x512xbf16>, vector<6x512xbf16>, vector<6x512xbf16>, vector<6x512xbf16>, vector<6x512xbf16>, vector<6x512xbf16>, vector<6x512xbf16>, vector<6x512xbf16>, vector<6x512xbf16> -> vector<54x512xbf16>
    %51 = tpu.concatenate %20, %30, %40, %50 in 1 : vector<54x512xbf16>, vector<54x512xbf16>, vector<54x512xbf16>, vector<54x512xbf16> -> vector<54x2048xbf16>
    %c0_2 = arith.constant 0 : index
    %c0_3 = arith.constant 0 : index
    %52 = vector.load %arg2[%c0_2, %c0_3] : memref<16x54xbf16, #tpu.memory_space<vmem>>, vector<16x54xbf16>
    %cst = arith.constant dense<0.000000e+00> : vector<16x2048xf32>
    %53 = tpu.matmul %52, %51, %cst {dimension_numbers = #tpu.dot_dimension_numbers<[1], [0], [0], [1], [0, 0, 1, 1], [], []>} : vector<16x54xbf16>, vector<54x2048xbf16>, vector<16x2048xf32> -> vector<16x2048xf32>
    %c0_4 = arith.constant 0 : index
    %c0_5 = arith.constant 0 : index
    %54 = vector.load %arg3[%c0_4, %c0_5] : memref<16x1xf32, #tpu.memory_space<vmem>>, vector<16x1xf32>
    %55 = vector.broadcast %54 : vector<16x1xf32> to vector<16x2048xf32>
    %56 = arith.addf %53, %55 : vector<16x2048xf32>
    %cst_6 = arith.constant 0.000000e+00 : f32
    %57 = vector.broadcast %cst_6 : f32 to vector<16x2048xf32>
    %58 = arith.maximumf %56, %57 : vector<16x2048xf32>
    %59 = arith.truncf %58 : vector<16x2048xf32> to vector<16x2048xbf16>
    %60 = vector.extract_strided_slice %59 {offsets = [0, 0], sizes = [16, 384], strides = [1, 1]} : vector<16x2048xbf16> to vector<16x384xbf16>
    %61 = vector.extract_strided_slice %59 {offsets = [0, 1], sizes = [16, 384], strides = [1, 1]} : vector<16x2048xbf16> to vector<16x384xbf16>
    %62 = vector.extract_strided_slice %59 {offsets = [0, 2], sizes = [16, 384], strides = [1, 1]} : vector<16x2048xbf16> to vector<16x384xbf16>
    %63 = vector.extract_strided_slice %59 {offsets = [0, 24], sizes = [16, 384], strides = [1, 1]} : vector<16x2048xbf16> to vector<16x384xbf16>
    %64 = vector.extract_strided_slice %59 {offsets = [0, 25], sizes = [16, 384], strides = [1, 1]} : vector<16x2048xbf16> to vector<16x384xbf16>
    %65 = vector.extract_strided_slice %59 {offsets = [0, 26], sizes = [16, 384], strides = [1, 1]} : vector<16x2048xbf16> to vector<16x384xbf16>
    %66 = vector.extract_strided_slice %59 {offsets = [0, 48], sizes = [16, 384], strides = [1, 1]} : vector<16x2048xbf16> to vector<16x384xbf16>
    %67 = vector.extract_strided_slice %59 {offsets = [0, 49], sizes = [16, 384], strides = [1, 1]} : vector<16x2048xbf16> to vector<16x384xbf16>
    %68 = vector.extract_strided_slice %59 {offsets = [0, 50], sizes = [16, 384], strides = [1, 1]} : vector<16x2048xbf16> to vector<16x384xbf16>
    %69 = tpu.concatenate %60, %61, %62, %63, %64, %65, %66, %67, %68 in 0 : vector<16x384xbf16>, vector<16x384xbf16>, vector<16x384xbf16>, vector<16x384xbf16>, vector<16x384xbf16>, vector<16x384xbf16>, vector<16x384xbf16>, vector<16x384xbf16>, vector<16x384xbf16> -> vector<144x384xbf16>
    %70 = vector.extract_strided_slice %59 {offsets = [0, 512], sizes = [16, 384], strides = [1, 1]} : vector<16x2048xbf16> to vector<16x384xbf16>
    %71 = vector.extract_strided_slice %59 {offsets = [0, 513], sizes = [16, 384], strides = [1, 1]} : vector<16x2048xbf16> to vector<16x384xbf16>
    %72 = vector.extract_strided_slice %59 {offsets = [0, 514], sizes = [16, 384], strides = [1, 1]} : vector<16x2048xbf16> to vector<16x384xbf16>
    %73 = vector.extract_strided_slice %59 {offsets = [0, 536], sizes = [16, 384], strides = [1, 1]} : vector<16x2048xbf16> to vector<16x384xbf16>
    %74 = vector.extract_strided_slice %59 {offsets = [0, 537], sizes = [16, 384], strides = [1, 1]} : vector<16x2048xbf16> to vector<16x384xbf16>
    %75 = vector.extract_strided_slice %59 {offsets = [0, 538], sizes = [16, 384], strides = [1, 1]} : vector<16x2048xbf16> to vector<16x384xbf16>
    %76 = vector.extract_strided_slice %59 {offsets = [0, 560], sizes = [16, 384], strides = [1, 1]} : vector<16x2048xbf16> to vector<16x384xbf16>
    %77 = vector.extract_strided_slice %59 {offsets = [0, 561], sizes = [16, 384], strides = [1, 1]} : vector<16x2048xbf16> to vector<16x384xbf16>
    %78 = vector.extract_strided_slice %59 {offsets = [0, 562], sizes = [16, 384], strides = [1, 1]} : vector<16x2048xbf16> to vector<16x384xbf16>
    %79 = tpu.concatenate %70, %71, %72, %73, %74, %75, %76, %77, %78 in 0 : vector<16x384xbf16>, vector<16x384xbf16>, vector<16x384xbf16>, vector<16x384xbf16>, vector<16x384xbf16>, vector<16x384xbf16>, vector<16x384xbf16>, vector<16x384xbf16>, vector<16x384xbf16> -> vector<144x384xbf16>
    %80 = vector.extract_strided_slice %59 {offsets = [0, 1024], sizes = [16, 384], strides = [1, 1]} : vector<16x2048xbf16> to vector<16x384xbf16>
    %81 = vector.extract_strided_slice %59 {offsets = [0, 1025], sizes = [16, 384], strides = [1, 1]} : vector<16x2048xbf16> to vector<16x384xbf16>
    %82 = vector.extract_strided_slice %59 {offsets = [0, 1026], sizes = [16, 384], strides = [1, 1]} : vector<16x2048xbf16> to vector<16x384xbf16>
    %83 = vector.extract_strided_slice %59 {offsets = [0, 1048], sizes = [16, 384], strides = [1, 1]} : vector<16x2048xbf16> to vector<16x384xbf16>
    %84 = vector.extract_strided_slice %59 {offsets = [0, 1049], sizes = [16, 384], strides = [1, 1]} : vector<16x2048xbf16> to vector<16x384xbf16>
    %85 = vector.extract_strided_slice %59 {offsets = [0, 1050], sizes = [16, 384], strides = [1, 1]} : vector<16x2048xbf16> to vector<16x384xbf16>
    %86 = vector.extract_strided_slice %59 {offsets = [0, 1072], sizes = [16, 384], strides = [1, 1]} : vector<16x2048xbf16> to vector<16x384xbf16>
    %87 = vector.extract_strided_slice %59 {offsets = [0, 1073], sizes = [16, 384], strides = [1, 1]} : vector<16x2048xbf16> to vector<16x384xbf16>
    %88 = vector.extract_strided_slice %59 {offsets = [0, 1074], sizes = [16, 384], strides = [1, 1]} : vector<16x2048xbf16> to vector<16x384xbf16>
    %89 = tpu.concatenate %80, %81, %82, %83, %84, %85, %86, %87, %88 in 0 : vector<16x384xbf16>, vector<16x384xbf16>, vector<16x384xbf16>, vector<16x384xbf16>, vector<16x384xbf16>, vector<16x384xbf16>, vector<16x384xbf16>, vector<16x384xbf16>, vector<16x384xbf16> -> vector<144x384xbf16>
    %90 = vector.extract_strided_slice %59 {offsets = [0, 1536], sizes = [16, 384], strides = [1, 1]} : vector<16x2048xbf16> to vector<16x384xbf16>
    %91 = vector.extract_strided_slice %59 {offsets = [0, 1537], sizes = [16, 384], strides = [1, 1]} : vector<16x2048xbf16> to vector<16x384xbf16>
    %92 = vector.extract_strided_slice %59 {offsets = [0, 1538], sizes = [16, 384], strides = [1, 1]} : vector<16x2048xbf16> to vector<16x384xbf16>
    %93 = vector.extract_strided_slice %59 {offsets = [0, 1560], sizes = [16, 384], strides = [1, 1]} : vector<16x2048xbf16> to vector<16x384xbf16>
    %94 = vector.extract_strided_slice %59 {offsets = [0, 1561], sizes = [16, 384], strides = [1, 1]} : vector<16x2048xbf16> to vector<16x384xbf16>
    %95 = vector.extract_strided_slice %59 {offsets = [0, 1562], sizes = [16, 384], strides = [1, 1]} : vector<16x2048xbf16> to vector<16x384xbf16>
    %96 = vector.extract_strided_slice %59 {offsets = [0, 1584], sizes = [16, 384], strides = [1, 1]} : vector<16x2048xbf16> to vector<16x384xbf16>
    %97 = vector.extract_strided_slice %59 {offsets = [0, 1585], sizes = [16, 384], strides = [1, 1]} : vector<16x2048xbf16> to vector<16x384xbf16>
    %98 = vector.extract_strided_slice %59 {offsets = [0, 1586], sizes = [16, 384], strides = [1, 1]} : vector<16x2048xbf16> to vector<16x384xbf16>
    %99 = tpu.concatenate %90, %91, %92, %93, %94, %95, %96, %97, %98 in 0 : vector<16x384xbf16>, vector<16x384xbf16>, vector<16x384xbf16>, vector<16x384xbf16>, vector<16x384xbf16>, vector<16x384xbf16>, vector<16x384xbf16>, vector<16x384xbf16>, vector<16x384xbf16> -> vector<144x384xbf16>
    %100 = tpu.concatenate %69, %79, %89, %99 in 1 : vector<144x384xbf16>, vector<144x384xbf16>, vector<144x384xbf16>, vector<144x384xbf16> -> vector<144x1536xbf16>
    %c0_7 = arith.constant 0 : index
    %c0_8 = arith.constant 0 : index
    %101 = vector.load %arg4[%c0_7, %c0_8] : memref<2x144xbf16, #tpu.memory_space<vmem>>, vector<2x144xbf16>
    %cst_9 = arith.constant dense<0.000000e+00> : vector<2x1536xf32>
    %102 = tpu.matmul %101, %100, %cst_9 {dimension_numbers = #tpu.dot_dimension_numbers<[1], [0], [0], [1], [0, 0, 1, 1], [], []>} : vector<2x144xbf16>, vector<144x1536xbf16>, vector<2x1536xf32> -> vector<2x1536xf32>
    %c0_10 = arith.constant 0 : index
    %c0_11 = arith.constant 0 : index
    %103 = vector.load %arg5[%c0_10, %c0_11] : memref<2x1xf32, #tpu.memory_space<vmem>>, vector<2x1xf32>
    %104 = vector.broadcast %103 : vector<2x1xf32> to vector<2x1536xf32>
    %105 = arith.addf %102, %104 : vector<2x1536xf32>
    %c0_12 = arith.constant 0 : index
    %c0_13 = arith.constant 0 : index
    %c0_14 = arith.constant 0 : index
    %106 = vector.load %arg6[%c0_12, %c0_13, %c0_14] : memref<1x2x1536xf32, #tpu.memory_space<vmem>>, vector<1x2x1536xf32>
    %107 = vector.shape_cast %106 : vector<1x2x1536xf32> to vector<2x1536xf32>
    %108 = vector.shape_cast %105 : vector<2x1536xf32> to vector<1x2x1536xf32>
    tpu.vector_store %arg6[%c0_12, %c0_13, %c0_14], %108 {strides = array<i32>} : memref<1x2x1536xf32, #tpu.memory_space<vmem>>, vector<1x2x1536xf32>,
    return
  }
  func.func @transform_0(%arg0: i32) -> (i32, i32, i32) {
    %c0_i32 = arith.constant 0 : i32
    %c0_i32_0 = arith.constant 0 : i32
    %c0_i32_1 = arith.constant 0 : i32
    return %arg0, %c0_i32, %c0_i32_0 : i32, i32, i32
  }
  func.func @transform_1(%arg0: i32) -> (i32, i32) {
    %c0_i32 = arith.constant 0 : i32
    %c0_i32_0 = arith.constant 0 : i32
    %c0_i32_1 = arith.constant 0 : i32
    return %c0_i32, %c0_i32_0 : i32, i32
  }
  func.func @transform_2(%arg0: i32) -> (i32, i32) {
    %c0_i32 = arith.constant 0 : i32
    %c0_i32_0 = arith.constant 0 : i32
    %c0_i32_1 = arith.constant 0 : i32
    return %c0_i32, %c0_i32_0 : i32, i32
  }
  func.func @transform_3(%arg0: i32) -> (i32, i32) {
    %c0_i32 = arith.constant 0 : i32
    %c0_i32_0 = arith.constant 0 : i32
    %c0_i32_1 = arith.constant 0 : i32
    return %c0_i32, %c0_i32_0 : i32, i32
  }
  func.func @transform_4(%arg0: i32) -> (i32, i32) {
    %c0_i32 = arith.constant 0 : i32
    %c0_i32_0 = arith.constant 0 : i32
    %c0_i32_1 = arith.constant 0 : i32
    return %c0_i32, %c0_i32_0 : i32, i32
  }
  func.func @transform_5(%arg0: i32) -> (i32, i32, i32) {
    %c0_i32 = arith.constant 0 : i32
    %c0_i32_0 = arith.constant 0 : i32
    %c0_i32_1 = arith.constant 0 : i32
    return %arg0, %c0_i32, %c0_i32_0 : i32, i32, i32
  }
}

</mosaic_0001>

<llo_original>
// kernel: eval_flow.1
$region0: #{eval_flow.1}
  #allocation0 [shape = 'u32[]', space=smem, size = 0x4, offset = 0x4, fixed_abs, tag = 'smem constant byte address 0x4 - core index']
  #allocation1 [shape = 'u32[144,128]{1,0:T(1,128)}', space=vmem, size = 0x12000, scoped, tag = 'internal scratch']
  %s0 = inlined_call_operand.vmem [shape: bf16[2,15,576], index: 0, kind: input, shape index: {}]
  %s1 = inlined_call_operand.vmem [shape: bf16[16,54], index: 1, kind: input, shape index: {}]
  %s2 = inlined_call_operand.vmem [shape: f32[16,1], index: 2, kind: input, shape index: {}]
  %s3 = inlined_call_operand.vmem [shape: bf16[2,144], index: 3, kind: input, shape index: {}]
  %s4 = inlined_call_operand.vmem [shape: f32[2,1], index: 4, kind: input, shape index: {}]
  %s5 = inlined_call_operand.vmem [shape: f32[2,2,1536], index: 5, kind: output, shape index: {}]
  %s6 = sld [smem:[#allocation0]]
  $region53: #{eval_flow.1} parent=0
    _
  %s8 = ssub.s32 1, %s6
  %s9 = scalar_select 0, %s8, %s6
  loop: start=0, step=1, limit=4
  $region2: #{eval_flow.1} parent=0 // loop_pre_header
    _
  $region3: #{eval_flow.1} parent=0 // loop_header
    %s11 = sphi 0, %s15
    %p12 = scmp.ge.s32.totalorder %s11, 4
    %s21 = sphi 0, %s23
    %s24 = sphi 0, %s21
    %s25 = sphi 0, %s24
    %s41 = sphi 0, %s25
    %s45 = sphi 0, %s45
    %s47 = sphi 0, %s45
    %s48 = sphi 0, %s47
    %s62 = sphi 0, %s48
    %s66 = sphi 0, %s66
    %s68 = sphi 0, %s66
    %s69 = sphi 0, %s68
    %s83 = sphi 0, %s69
    %s87 = sphi 0, %s87
    %s89 = sphi 0, %s87
    %s90 = sphi 0, %s89
    %s104 = sphi 0, %s90
    %s108 = sphi 0, %s108
    %s110 = sphi 0, %s108
    %s111 = sphi 0, %s110
    %s125 = sphi 0, %s111
    %s131 = sphi 0, %s133
    %s134 = sphi 0, %s131
    %s135 = sphi 0, %s134
    %s151 = sphi 0, %s135
  $region4: #{eval_flow.1} parent=0 // loop_header_branch
    %14 = sbr.rel (%p12) target = $region8
  $region5: #{eval_flow.1} parent=0 // loop_body
    %s16 = ssub.s32 %s11, 1
    %s17 = ssub.s32 %s11, 2
    %s18 = sadd.s32 %s11, 1
    %s19 = ssub.s32 %s11, %s18
    %p20 = scmp.eq.s32.totalorder %s19, 0
    %s22 = sadd.s32 %s21, 1
    %s23 = scalar_select %p20, %s21, %s22
    %p26 = pneg %p20
    %p27 = scmp.eq.s32.totalorder %s11, 1
    %p28 = por %p26, %p27
    %p29 = scmp.ne.s32.totalorder %s21, %s24
    %p30 = scmp.eq.s32.totalorder %s11, 0
    %p31 = por %p29, %p30
    %p32 = scmp.ne.s32.totalorder %s21, %s24
    %p33 = scmp.eq.s32.totalorder %s16, 1
    %p34 = por %p32, %p33
    %p35 = scmp.ne.s32.totalorder %s24, %s25
    %p36 = scmp.eq.s32.totalorder %s16, 0
    %p37 = por %p35, %p36
    %p38 = scmp.ne.s32.totalorder %s24, %s25
    %p39 = scmp.eq.s32.totalorder %s17, 1
    %p40 = por %p38, %p39
    %p42 = scmp.ne.s32.totalorder %s25, %s41
    %p43 = scmp.eq.s32.totalorder %s17, 0
    %p44 = por %p42, %p43
    %s46 = sadd.s32 %s45, 1
    %p49 = scmp.eq.s32.totalorder %s11, 1
    %p50 = scmp.ne.s32.totalorder %s45, %s47
    %p51 = scmp.eq.s32.totalorder %s11, 0
    %p52 = por %p50, %p51
    %p53 = scmp.ne.s32.totalorder %s45, %s47
    %p54 = scmp.eq.s32.totalorder %s16, 1
    %p55 = por %p53, %p54
    %p56 = scmp.ne.s32.totalorder %s47, %s48
    %p57 = scmp.eq.s32.totalorder %s16, 0
    %p58 = por %p56, %p57
    %p59 = scmp.ne.s32.totalorder %s47, %s48
    %p60 = scmp.eq.s32.totalorder %s17, 1
    %p61 = por %p59, %p60
    %p63 = scmp.ne.s32.totalorder %s48, %s62
    %p64 = scmp.eq.s32.totalorder %s17, 0
    %p65 = por %p63, %p64
    %s67 = sadd.s32 %s66, 1
    %p70 = scmp.eq.s32.totalorder %s11, 1
    %p71 = scmp.ne.s32.totalorder %s66, %s68
    %p72 = scmp.eq.s32.totalorder %s11, 0
    %p73 = por %p71, %p72
    %p74 = scmp.ne.s32.totalorder %s66, %s68
    %p75 = scmp.eq.s32.totalorder %s16, 1
    %p76 = por %p74, %p75
    %p77 = scmp.ne.s32.totalorder %s68, %s69
    %p78 = scmp.eq.s32.totalorder %s16, 0
    %p79 = por %p77, %p78
    %p80 = scmp.ne.s32.totalorder %s68, %s69
    %p81 = scmp.eq.s32.totalorder %s17, 1
    %p82 = por %p80, %p81
    %p84 = scmp.ne.s32.totalorder %s69, %s83
    %p85 = scmp.eq.s32.totalorder %s17, 0
    %p86 = por %p84, %p85
    %s88 = sadd.s32 %s87, 1
    %p91 = scmp.eq.s32.totalorder %s11, 1
    %p92 = scmp.ne.s32.totalorder %s87, %s89
    %p93 = scmp.eq.s32.totalorder %s11, 0
    %p94 = por %p92, %p93
    %p95 = scmp.ne.s32.totalorder %s87, %s89
    %p96 = scmp.eq.s32.totalorder %s16, 1
    %p97 = por %p95, %p96
    %p98 = scmp.ne.s32.totalorder %s89, %s90
    %p99 = scmp.eq.s32.totalorder %s16, 0
    %p100 = por %p98, %p99
    %p101 = scmp.ne.s32.totalorder %s89, %s90
    %p102 = scmp.eq.s32.totalorder %s17, 1
    %p103 = por %p101, %p102
    %p105 = scmp.ne.s32.totalorder %s90, %s104
    %p106 = scmp.eq.s32.totalorder %s17, 0
    %p107 = por %p105, %p106
    %s109 = sadd.s32 %s108, 1
    %p112 = scmp.eq.s32.totalorder %s11, 1
    %p113 = scmp.ne.s32.totalorder %s108, %s110
    %p114 = scmp.eq.s32.totalorder %s11, 0
    %p115 = por %p113, %p114
    %p116 = scmp.ne.s32.totalorder %s108, %s110
    %p117 = scmp.eq.s32.totalorder %s16, 1
    %p118 = por %p116, %p117
    %p119 = scmp.ne.s32.totalorder %s110, %s111
    %p120 = scmp.eq.s32.totalorder %s16, 0
    %p121 = por %p119, %p120
    %p122 = scmp.ne.s32.totalorder %s110, %s111
    %p123 = scmp.eq.s32.totalorder %s17, 1
    %p124 = por %p122, %p123
    %p126 = scmp.ne.s32.totalorder %s111, %s125
    %p127 = scmp.eq.s32.totalorder %s17, 0
    %p128 = por %p126, %p127
    %s129 = ssub.s32 %s11, %s18
    %p130 = scmp.eq.s32.totalorder %s129, 0
    %s132 = sadd.s32 %s131, 1
    %s133 = scalar_select %p130, %s131, %s132
    %p136 = pneg %p130
    %p137 = scmp.eq.s32.totalorder %s11, 1
    %p138 = por %p136, %p137
    %p139 = scmp.ne.s32.totalorder %s131, %s134
    %p140 = scmp.eq.s32.totalorder %s11, 0
    %p141 = por %p139, %p140
    %p142 = scmp.ne.s32.totalorder %s131, %s134
    %p143 = scmp.eq.s32.totalorder %s16, 1
    %p144 = por %p142, %p143
    %p145 = scmp.ne.s32.totalorder %s134, %s135
    %p146 = scmp.eq.s32.totalorder %s16, 0
    %p147 = por %p145, %p146
    %p148 = scmp.ne.s32.totalorder %s134, %s135
    %p149 = scmp.eq.s32.totalorder %s17, 1
    %p150 = por %p148, %p149
    %p152 = scmp.ne.s32.totalorder %s135, %s151
    %p153 = scmp.eq.s32.totalorder %s17, 0
    %p154 = por %p152, %p153
    %p155 = scmp.le.s32.totalorder 1, %s11
    %p156 = scmp.lt.s32.totalorder %s11, 3
    %p157 = pnand %p155, %p156
    %p158 = pneg %p157
    // Predicated region
    $region9: #{eval_flow.1} parent=5 // pred_check
      _
    $region10: #{eval_flow.1} parent=5 // pred_check_branch
      %160 = sbr.rel (%p157) target = $region12
    $region11: #{eval_flow.1} parent=5 // pred_region
      %s161 = ssub.s32 %s11, 1
      // Predicated region
      $region13: #{eval_flow.1} parent=11 // pred_check
        %p162 = pneg %p58
      $region14: #{eval_flow.1} parent=11 // pred_check_branch
        %164 = sbr.rel (%p162) target = $region16
      $region15: #{eval_flow.1} parent=11 // pred_region
        _
      $region16: #{eval_flow.1} parent=11 // pred_fallthru
        _
      // Predicated region
      $region17: #{eval_flow.1} parent=11 // pred_check
        %p165 = pneg %p79
      $region18: #{eval_flow.1} parent=11 // pred_check_branch
        %167 = sbr.rel (%p165) target = $region20
      $region19: #{eval_flow.1} parent=11 // pred_region
        _
      $region20: #{eval_flow.1} parent=11 // pred_fallthru
        _
      // Predicated region
      $region21: #{eval_flow.1} parent=11 // pred_check
        %p168 = pneg %p100
      $region22: #{eval_flow.1} parent=11 // pred_check_branch
        %170 = sbr.rel (%p168) target = $region24
      $region23: #{eval_flow.1} parent=11 // pred_region
        _
      $region24: #{eval_flow.1} parent=11 // pred_fallthru
        _
      // Predicated region
      $region25: #{eval_flow.1} parent=11 // pred_check
        %p171 = pneg %p121
      $region26: #{eval_flow.1} parent=11 // pred_check_branch
        %173 = sbr.rel (%p171) target = $region28
      $region27: #{eval_flow.1} parent=11 // pred_region
        _
      $region28: #{eval_flow.1} parent=11 // pred_fallthru
        _
    $region12: #{eval_flow.1} parent=5 // pred_fallthru
      _
    %p174 = scmp.lt.s32.totalorder %s11, 2
    // Predicated region
    $region29: #{eval_flow.1} parent=5 // pred_check
      %p175 = pneg %p174
    $region30: #{eval_flow.1} parent=5 // pred_check_branch
      %177 = sbr.rel (%p175) target = $region32
    $region31: #{eval_flow.1} parent=5 // pred_region
      // Predicated region
      $region33: #{eval_flow.1} parent=31 // pred_check
        %p178 = pneg %p31
      $region34: #{eval_flow.1} parent=31 // pred_check_branch
        %180 = sbr.rel (%p178) target = $region36
      $region35: #{eval_flow.1} parent=31 // pred_region
        %p181 = scmp.lt.s32.totalorder %s11, 1
        %s182 = scalar_select %p181, %s11, 1
        %s183 = smul.addr %s182, 10
        %s184 = smul.addr %s183, 4
        %s185 = scalar_lea.vmem %s0, %s184
      $region36: #{eval_flow.1} parent=31 // pred_fallthru
        _
    $region32: #{eval_flow.1} parent=5 // pred_fallthru
      _
    %p186 = scmp.le.s32.totalorder 1, %s11
    %p187 = scmp.lt.s32.totalorder %s11, 3
    %p188 = pnand %p186, %p187
    %p189 = pneg %p188
    // Predicated region
    $region37: #{eval_flow.1} parent=5 // pred_check
      _
    $region38: #{eval_flow.1} parent=5 // pred_check_branch
      %191 = sbr.rel (%p188) target = $region40
    $region39: #{eval_flow.1} parent=5 // pred_region
      %s192 = ssub.s32 %s11, 1
      %p193 = scmp.lt.s32.totalorder %s16, 1
      %s194 = scalar_select %p193, %s16, 1
      %s195 = smul.addr %s194, 10
      %s196 = smul.addr %s195, 4
      %s197 = scalar_lea.vmem %s0, %s196
      %p198 = pneg %p37
      %p199 = pneg %p34
      %p200 = pneg %p58
      %p201 = pneg %p55
      %p202 = pneg %p79
      %p203 = pneg %p76
      %p204 = pneg %p100
      %p205 = pneg %p97
      %p206 = pneg %p121
      %p207 = pneg %p118
      %p208 = pneg %p147
      %p209 = pneg %p144
      %p210 = scmp.lt.s32.totalorder %s16, 1
      %s211 = scalar_select %p210, %s16, 1
      %s212 = smul.addr %s211, 12
      %s213 = smul.addr %s212, 2
      %s214 = scalar_lea.vmem %s5, %s213
      %p215 = scmp.lt.s32.totalorder %s16, 1
      %s216 = scalar_select %p215, %s16, 1
      %s217 = smul.addr %s216, 10
      %s218 = smul.addr %s217, 4
      %s219 = scalar_lea.vmem %s0, %s218
      %p220 = scmp.lt.s32.totalorder %s16, 1
      %s221 = scalar_select %p220, %s16, 1
      %s222 = smul.addr %s221, 12
      %s223 = smul.addr %s222, 2
      %s224 = scalar_lea.vmem %s5, %s223
      %v226 = vld [vmem:[%s219] sm:$0xff]
      %v227 = vld [vmem:[%s219 + $0x8] sm:$0xff]
      %v228 = vld [vmem:[%s219 + $0x10] sm:$0xf]
      %v229 = vld [vmem:[%s219 + $0x14] sm:$0xff]
      %v230 = vld [vmem:[%s219 + $0x1c] sm:$0xff]
      %v231 = vld [vmem:[%s219 + $0x24] sm:$0xf]
      %v234 = vunpack.c.l.b16 %v226
      %v235 = vunpack.c.h.b16 %v226
      %v236 = vunpack.c.l.b16 %v227
      %v237 = vunpack.c.h.b16 %v227
      %v238 = vpack.c.b16 %v234, %v234
      %v239 = vpack.c.b16 %v235, %v235
      %v240 = vpack.c.b16 %v236, %v236
      %v241 = vpack.c.b16 %v237, %v237
      %v243 = vunpack.c.l.b16 %v228
      %v244 = vpack.c.b16 %v243, %v243
      %v245 = vrot.slane %v238, 5
      %v246 = vrot.slane %v239, 5
      %v247 = vrot.slane %v240, 5
      %v248 = vrot.slane %v241, 5
      %v249 = vrot.slane %v244, 5
      %250 = vrot.lane.b32.xlu0 %v245, 127
      %v251 = vpop.permute.xlu0 %250
      %252 = vrot.lane.b32.xlu0 %v246, 127
      %v253 = vpop.permute.xlu0 %252
      %254 = vrot.lane.b32.xlu0 %v247, 127
      %v255 = vpop.permute.xlu0 %254
      %256 = vrot.lane.b32.xlu0 %v248, 127
      %v257 = vpop.permute.xlu0 %256
      %258 = vrot.lane.b32.xlu0 %v249, 127
      %v259 = vpop.permute.xlu0 %258
      %vm260 = vcmask 1039360
      %v261 = vsel %vm260, %v251, %v253
      %v262 = vsel %vm260, %v253, %v255
      %v263 = vsel %vm260, %v255, %v257
      %v264 = vsel %vm260, %v257, %v259
      %v265 = vrot.slane %v238, 2
      %v266 = vrot.slane %v239, 2
      %v267 = vrot.slane %v240, 2
      %v268 = vrot.slane %v241, 2
      %v269 = vrot.slane %v244, 2
      %270 = vrot.lane.b32.xlu0 %v265, 126
      %v271 = vpop.permute.xlu0 %270
      %272 = vrot.lane.b32.xlu0 %v266, 126
      %v273 = vpop.permute.xlu0 %272
      %274 = vrot.lane.b32.xlu0 %v267, 126
      %v275 = vpop.permute.xlu0 %274
      %276 = vrot.lane.b32.xlu0 %v268, 126
      %v277 = vpop.permute.xlu0 %276
      %278 = vrot.lane.b32.xlu0 %v269, 126
      %v279 = vpop.permute.xlu0 %278
      %vm280 = vcmask 1031168
      %v281 = vsel %vm280, %v271, %v273
      %v282 = vsel %vm280, %v273, %v275
      %v283 = vsel %vm280, %v275, %v277
      %v284 = vsel %vm280, %v277, %v279
      %v285 = vrot.slane %v238, 7
      %v286 = vrot.slane %v239, 7
      %v287 = vrot.slane %v240, 7
      %v288 = vrot.slane %v241, 7
      %v289 = vrot.slane %v244, 7
      %290 = vrot.lane.b32.xlu0 %v285, 104
      %v291 = vpop.permute.xlu0 %290
      %292 = vrot.lane.b32.xlu0 %v286, 104
      %v293 = vpop.permute.xlu0 %292
      %294 = vrot.lane.b32.xlu0 %v287, 104
      %v295 = vpop.permute.xlu0 %294
      %296 = vrot.lane.b32.xlu0 %v288, 104
      %v297 = vpop.permute.xlu0 %296
      %298 = vrot.lane.b32.xlu0 %v289, 104
      %v299 = vpop.permute.xlu0 %298
      %vm300 = vcmask 850944
      %v301 = vsel %vm300, %v291, %v293
      %v302 = vsel %vm300, %v293, %v295
      %v303 = vsel %vm300, %v295, %v297
      %v304 = vsel %vm300, %v297, %v299
      %305 = vrot.lane.b32.xlu0 %v238, 103
      %v306 = vpop.permute.xlu0 %305
      %307 = vrot.lane.b32.xlu0 %v239, 103
      %v308 = vpop.permute.xlu0 %307
      %309 = vrot.lane.b32.xlu0 %v240, 103
      %v310 = vpop.permute.xlu0 %309
      %311 = vrot.lane.b32.xlu0 %v241, 103
      %v312 = vpop.permute.xlu0 %311
      %313 = vrot.lane.b32.xlu0 %v244, 103
      %v314 = vpop.permute.xlu0 %313
      %vm315 = vcmask 842752
      %v316 = vsel %vm315, %v306, %v308
      %v317 = vsel %vm315, %v308, %v310
      %v318 = vsel %vm315, %v310, %v312
      %v319 = vsel %vm315, %v312, %v314
      %v320 = vrot.slane %v238, 1
      %v321 = vrot.slane %v239, 1
      %v322 = vrot.slane %v240, 1
      %v323 = vrot.slane %v241, 1
      %v324 = vrot.slane %v244, 1
      %325 = vrot.lane.b32.xlu0 %v320, 102
      %v326 = vpop.permute.xlu0 %325
      %327 = vrot.lane.b32.xlu0 %v321, 102
      %v328 = vpop.permute.xlu0 %327
      %329 = vrot.lane.b32.xlu0 %v322, 102
      %v330 = vpop.permute.xlu0 %329
      %331 = vrot.lane.b32.xlu0 %v323, 102
      %v332 = vpop.permute.xlu0 %331
      %333 = vrot.lane.b32.xlu0 %v324, 102
      %v334 = vpop.permute.xlu0 %333
      %vm335 = vcmask 834560
      %v336 = vsel %vm335, %v326, %v328
      %v337 = vsel %vm335, %v328, %v330
      %v338 = vsel %vm335, %v330, %v332
      %v339 = vsel %vm335, %v332, %v334
      %v340 = vrot.slane %v238, 6
      %v341 = vrot.slane %v239, 6
      %v342 = vrot.slane %v240, 6
      %v343 = vrot.slane %v241, 6
      %v344 = vrot.slane %v244, 6
      %345 = vrot.lane.b32.xlu0 %v340, 80
      %v346 = vpop.permute.xlu0 %345
      %347 = vrot.lane.b32.xlu0 %v341, 80
      %v348 = vpop.permute.xlu0 %347
      %349 = vrot.lane.b32.xlu0 %v342, 80
      %v350 = vpop.permute.xlu0 %349
      %351 = vrot.lane.b32.xlu0 %v343, 80
      %v352 = vpop.permute.xlu0 %351
      %353 = vrot.lane.b32.xlu0 %v344, 80
      %v354 = vpop.permute.xlu0 %353
      %vm355 = vcmask 654336
      %v356 = vsel %vm355, %v346, %v348
      %v357 = vsel %vm355, %v348, %v350
      %v358 = vsel %vm355, %v350, %v352
      %v359 = vsel %vm355, %v352, %v354
      %v360 = vrot.slane %v238, 3
      %v361 = vrot.slane %v239, 3
      %v362 = vrot.slane %v240, 3
      %v363 = vrot.slane %v241, 3
      %v364 = vrot.slane %v244, 3
      %365 = vrot.lane.b32.xlu0 %v360, 79
      %v366 = vpop.permute.xlu0 %365
      %367 = vrot.lane.b32.xlu0 %v361, 79
      %v368 = vpop.permute.xlu0 %367
      %369 = vrot.lane.b32.xlu0 %v362, 79
      %v370 = vpop.permute.xlu0 %369
      %371 = vrot.lane.b32.xlu0 %v363, 79
      %v372 = vpop.permute.xlu0 %371
      %373 = vrot.lane.b32.xlu0 %v364, 79
      %v374 = vpop.permute.xlu0 %373
      %vm375 = vcmask 646144
      %v376 = vsel %vm375, %v366, %v368
      %v377 = vsel %vm375, %v368, %v370
      %v378 = vsel %vm375, %v370, %v372
      %v379 = vsel %vm375, %v372, %v374
      %380 = vrot.lane.b32.xlu0 %v238, 78
      %v381 = vpop.permute.xlu0 %380
      %382 = vrot.lane.b32.xlu0 %v239, 78
      %v383 = vpop.permute.xlu0 %382
      %384 = vrot.lane.b32.xlu0 %v240, 78
      %v385 = vpop.permute.xlu0 %384
      %386 = vrot.lane.b32.xlu0 %v241, 78
      %v387 = vpop.permute.xlu0 %386
      %388 = vrot.lane.b32.xlu0 %v244, 78
      %v389 = vpop.permute.xlu0 %388
      %vm390 = vcmask 637952
      %v391 = vsel %vm390, %v381, %v383
      %v392 = vsel %vm390, %v383, %v385
      %v393 = vsel %vm390, %v385, %v387
      %v394 = vsel %vm390, %v387, %v389
      %vm395 = vcmask 1042432
      %v398 = vsel %vm395, %v238, %v261
      %v401 = vsel %vm395, %v239, %v262
      %v404 = vsel %vm395, %v240, %v263
      %v407 = vsel %vm395, %v241, %v264
      %vm408 = vcmask 1045504
      %v410 = vsel %vm408, %v398, %v281
      %v413 = vsel %vm408, %v401, %v282
      %v416 = vsel %vm408, %v404, %v283
      %v419 = vsel %vm408, %v407, %v284
      %vm421 = vcmask 1040384
      %v423 = vsel %vm421, %v281, %v301
      %v425 = vsel %vm421, %v282, %v302
      %v427 = vsel %vm421, %v283, %v303
      %v429 = vsel %vm421, %v284, %v304
      %vm430 = vcmask 1043456
      %v432 = vsel %vm430, %v423, %v316
      %v434 = vsel %vm430, %v425, %v317
      %v436 = vsel %vm430, %v427, %v318
      %v438 = vsel %vm430, %v429, %v319
      %vm439 = vcmask 1046528
      %v441 = vsel %vm439, %v432, %v336
      %v444 = vsel %vm439, %v434, %v337
      %v447 = vsel %vm439, %v436, %v338
      %v450 = vsel %vm439, %v438, %v339
      %vm452 = vcmask 1041408
      %v454 = vsel %vm452, %v336, %v356
      %v456 = vsel %vm452, %v337, %v357
      %v458 = vsel %vm452, %v338, %v358
      %v460 = vsel %vm452, %v339, %v359
      %vm461 = vcmask 1044480
      %v463 = vsel %vm461, %v454, %v376
      %v466 = vsel %vm461, %v456, %v377
      %v469 = vsel %vm461, %v458, %v378
      %v472 = vsel %vm461, %v460, %v379
      %v476 = vunpack.c.l.b16 %v229
      %v477 = vunpack.c.h.b16 %v229
      %v478 = vunpack.c.l.b16 %v230
      %v479 = vunpack.c.h.b16 %v230
      %v480 = vpack.c.b16 %v476, %v234
      %v481 = vpack.c.b16 %v477, %v235
      %v482 = vpack.c.b16 %v478, %v236
      %v483 = vpack.c.b16 %v479, %v237
      %v485 = vshrl.u32 %v480, 16
      %v487 = vrot.slane %v485, 1
      %v488 = vshll.u32 %v480, 16
      %v490 = vrot.slane %v488, 2
      %v491 = vor.u32 %v487, %v490
      %v493 = vshrl.u32 %v481, 16
      %v495 = vrot.slane %v493, 1
      %v496 = vshll.u32 %v481, 16
      %v498 = vrot.slane %v496, 2
      %v499 = vor.u32 %v495, %v498
      %v501 = vshrl.u32 %v482, 16
      %v503 = vrot.slane %v501, 1
      %v504 = vshll.u32 %v482, 16
      %v506 = vrot.slane %v504, 2
      %v507 = vor.u32 %v503, %v506
      %v509 = vshrl.u32 %v483, 16
      %v511 = vrot.slane %v509, 1
      %v512 = vshll.u32 %v483, 16
      %v514 = vrot.slane %v512, 2
      %v515 = vor.u32 %v511, %v514
      %v517 = vunpack.c.l.b16 %v231
      %v518 = vpack.c.b16 %v517, %v243
      %v519 = vrot.slane %v485, 6
      %v520 = vrot.slane %v488, 7
      %v521 = vor.u32 %v519, %v520
      %v522 = vrot.slane %v493, 6
      %v523 = vrot.slane %v496, 7
      %v524 = vor.u32 %v522, %v523
      %v525 = vrot.slane %v501, 6
      %v526 = vrot.slane %v504, 7
      %v527 = vor.u32 %v525, %v526
      %v528 = vrot.slane %v509, 6
      %v529 = vrot.slane %v512, 7
      %v530 = vor.u32 %v528, %v529
      %v532 = vshrl.u32 %v518, 16
      %v534 = vrot.slane %v532, 6
      %v535 = vshll.u32 %v518, 16
      %v537 = vrot.slane %v535, 7
      %v538 = vor.u32 %v534, %v537
      %539 = vrot.lane.b32.xlu0 %v521, 127
      %v540 = vpop.permute.xlu0 %539
      %541 = vrot.lane.b32.xlu0 %v524, 127
      %v542 = vpop.permute.xlu0 %541
      %543 = vrot.lane.b32.xlu0 %v527, 127
      %v544 = vpop.permute.xlu0 %543
      %545 = vrot.lane.b32.xlu0 %v530, 127
      %v546 = vpop.permute.xlu0 %545
      %547 = vrot.lane.b32.xlu0 %v538, 127
      %v548 = vpop.permute.xlu0 %547
      %v549 = vsel %vm260, %v540, %v542
      %v550 = vsel %vm260, %v542, %v544
      %v551 = vsel %vm260, %v544, %v546
      %v552 = vsel %vm260, %v546, %v548
      %v553 = vrot.slane %v485, 3
      %v554 = vrot.slane %v488, 4
      %v555 = vor.u32 %v553, %v554
      %v556 = vrot.slane %v493, 3
      %v557 = vrot.slane %v496, 4
      %v558 = vor.u32 %v556, %v557
      %v559 = vrot.slane %v501, 3
      %v560 = vrot.slane %v504, 4
      %v561 = vor.u32 %v559, %v560
      %v562 = vrot.slane %v509, 3
      %v563 = vrot.slane %v512, 4
      %v564 = vor.u32 %v562, %v563
      %v565 = vrot.slane %v532, 3
      %v566 = vrot.slane %v535, 4
      %v567 = vor.u32 %v565, %v566
      %568 = vrot.lane.b32.xlu0 %v555, 126
      %v569 = vpop.permute.xlu0 %568
      %570 = vrot.lane.b32.xlu0 %v558, 126
      %v571 = vpop.permute.xlu0 %570
      %572 = vrot.lane.b32.xlu0 %v561, 126
      %v573 = vpop.permute.xlu0 %572
      %574 = vrot.lane.b32.xlu0 %v564, 126
      %v575 = vpop.permute.xlu0 %574
      %576 = vrot.lane.b32.xlu0 %v567, 126
      %v577 = vpop.permute.xlu0 %576
      %v578 = vsel %vm280, %v569, %v571
      %v579 = vsel %vm280, %v571, %v573
      %v580 = vsel %vm280, %v573, %v575
      %v581 = vsel %vm280, %v575, %v577
      %v582 = vrot.slane %v488, 1
      %v583 = vor.u32 %v485, %v582
      %v584 = vrot.slane %v496, 1
      %v585 = vor.u32 %v493, %v584
      %v586 = vrot.slane %v504, 1
      %v587 = vor.u32 %v501, %v586
      %v588 = vrot.slane %v512, 1
      %v589 = vor.u32 %v509, %v588
      %v590 = vrot.slane %v535, 1
      %v591 = vor.u32 %v532, %v590
      %592 = vrot.lane.b32.xlu0 %v583, 104
      %v593 = vpop.permute.xlu0 %592
      %594 = vrot.lane.b32.xlu0 %v585, 104
      %v595 = vpop.permute.xlu0 %594
      %596 = vrot.lane.b32.xlu0 %v587, 104
      %v597 = vpop.permute.xlu0 %596
      %598 = vrot.lane.b32.xlu0 %v589, 104
      %v599 = vpop.permute.xlu0 %598
      %600 = vrot.lane.b32.xlu0 %v591, 104
      %v601 = vpop.permute.xlu0 %600
      %v602 = vsel %vm300, %v593, %v595
      %v603 = vsel %vm300, %v595, %v597
      %v604 = vsel %vm300, %v597, %v599
      %v605 = vsel %vm300, %v599, %v601
      %v606 = vrot.slane %v485, 5
      %v607 = vrot.slane %v488, 6
      %v608 = vor.u32 %v606, %v607
      %v609 = vrot.slane %v493, 5
      %v610 = vrot.slane %v496, 6
      %v611 = vor.u32 %v609, %v610
      %v612 = vrot.slane %v501, 5
      %v613 = vrot.slane %v504, 6
      %v614 = vor.u32 %v612, %v613
      %v615 = vrot.slane %v509, 5
      %v616 = vrot.slane %v512, 6
      %v617 = vor.u32 %v615, %v616
      %v618 = vrot.slane %v532, 5
      %v619 = vrot.slane %v535, 6
      %v620 = vor.u32 %v618, %v619
      %621 = vrot.lane.b32.xlu0 %v608, 103
      %v622 = vpop.permute.xlu0 %621
      %623 = vrot.lane.b32.xlu0 %v611, 103
      %v624 = vpop.permute.xlu0 %623
      %625 = vrot.lane.b32.xlu0 %v614, 103
      %v626 = vpop.permute.xlu0 %625
      %627 = vrot.lane.b32.xlu0 %v617, 103
      %v628 = vpop.permute.xlu0 %627
      %629 = vrot.lane.b32.xlu0 %v620, 103
      %v630 = vpop.permute.xlu0 %629
      %v631 = vsel %vm315, %v622, %v624
      %v632 = vsel %vm315, %v624, %v626
      %v633 = vsel %vm315, %v626, %v628
      %v634 = vsel %vm315, %v628, %v630
      %v635 = vrot.slane %v485, 2
      %v636 = vrot.slane %v488, 3
      %v637 = vor.u32 %v635, %v636
      %v638 = vrot.slane %v493, 2
      %v639 = vrot.slane %v496, 3
      %v640 = vor.u32 %v638, %v639
      %v641 = vrot.slane %v501, 2
      %v642 = vrot.slane %v504, 3
      %v643 = vor.u32 %v641, %v642
      %v644 = vrot.slane %v509, 2
      %v645 = vrot.slane %v512, 3
      %v646 = vor.u32 %v644, %v645
      %v647 = vrot.slane %v532, 2
      %v648 = vrot.slane %v535, 3
      %v649 = vor.u32 %v647, %v648
      %650 = vrot.lane.b32.xlu0 %v637, 102
      %v651 = vpop.permute.xlu0 %650
      %652 = vrot.lane.b32.xlu0 %v640, 102
      %v653 = vpop.permute.xlu0 %652
      %654 = vrot.lane.b32.xlu0 %v643, 102
      %v655 = vpop.permute.xlu0 %654
      %656 = vrot.lane.b32.xlu0 %v646, 102
      %v657 = vpop.permute.xlu0 %656
      %658 = vrot.lane.b32.xlu0 %v649, 102
      %v659 = vpop.permute.xlu0 %658
      %v660 = vsel %vm335, %v651, %v653
      %v661 = vsel %vm335, %v653, %v655
      %v662 = vsel %vm335, %v655, %v657
      %v663 = vsel %vm335, %v657, %v659
      %v664 = vrot.slane %v485, 7
      %v665 = vor.u32 %v664, %v488
      %v666 = vrot.slane %v493, 7
      %v667 = vor.u32 %v666, %v496
      %v668 = vrot.slane %v501, 7
      %v669 = vor.u32 %v668, %v504
      %v670 = vrot.slane %v509, 7
      %v671 = vor.u32 %v670, %v512
      %v672 = vrot.slane %v532, 7
      %v673 = vor.u32 %v672, %v535
      %674 = vrot.lane.b32.xlu0 %v665, 80
      %v675 = vpop.permute.xlu0 %674
      %676 = vrot.lane.b32.xlu0 %v667, 80
      %v677 = vpop.permute.xlu0 %676
      %678 = vrot.lane.b32.xlu0 %v669, 80
      %v679 = vpop.permute.xlu0 %678
      %680 = vrot.lane.b32.xlu0 %v671, 80
      %v681 = vpop.permute.xlu0 %680
      %682 = vrot.lane.b32.xlu0 %v673, 80
      %v683 = vpop.permute.xlu0 %682
      %v684 = vsel %vm355, %v675, %v677
      %v685 = vsel %vm355, %v677, %v679
      %v686 = vsel %vm355, %v679, %v681
      %v687 = vsel %vm355, %v681, %v683
      %v688 = vrot.slane %v485, 4
      %v689 = vrot.slane %v488, 5
      %v690 = vor.u32 %v688, %v689
      %v691 = vrot.slane %v493, 4
      %v692 = vrot.slane %v496, 5
      %v693 = vor.u32 %v691, %v692
      %v694 = vrot.slane %v501, 4
      %v695 = vrot.slane %v504, 5
      %v696 = vor.u32 %v694, %v695
      %v697 = vrot.slane %v509, 4
      %v698 = vrot.slane %v512, 5
      %v699 = vor.u32 %v697, %v698
      %v700 = vrot.slane %v532, 4
      %v701 = vrot.slane %v535, 5
      %v702 = vor.u32 %v700, %v701
      %703 = vrot.lane.b32.xlu0 %v690, 79
      %v704 = vpop.permute.xlu0 %703
      %705 = vrot.lane.b32.xlu0 %v693, 79
      %v706 = vpop.permute.xlu0 %705
      %707 = vrot.lane.b32.xlu0 %v696, 79
      %v708 = vpop.permute.xlu0 %707
      %709 = vrot.lane.b32.xlu0 %v699, 79
      %v710 = vpop.permute.xlu0 %709
      %711 = vrot.lane.b32.xlu0 %v702, 79
      %v712 = vpop.permute.xlu0 %711
      %v713 = vsel %vm375, %v704, %v706
      %v714 = vsel %vm375, %v706, %v708
      %v715 = vsel %vm375, %v708, %v710
      %v716 = vsel %vm375, %v710, %v712
      %v717 = vrot.slane %v532, 1
      %v718 = vrot.slane %v535, 2
      %v719 = vor.u32 %v717, %v718
      %720 = vrot.lane.b32.xlu0 %v491, 78
      %v721 = vpop.permute.xlu0 %720
      %722 = vrot.lane.b32.xlu0 %v499, 78
      %v723 = vpop.permute.xlu0 %722
      %724 = vrot.lane.b32.xlu0 %v507, 78
      %v725 = vpop.permute.xlu0 %724
      %726 = vrot.lane.b32.xlu0 %v515, 78
      %v727 = vpop.permute.xlu0 %726
      %728 = vrot.lane.b32.xlu0 %v719, 78
      %v729 = vpop.permute.xlu0 %728
      %v730 = vsel %vm390, %v721, %v723
      %v731 = vsel %vm390, %v723, %v725
      %v732 = vsel %vm390, %v725, %v727
      %v733 = vsel %vm390, %v727, %v729
      %v736 = vsel %vm395, %v491, %v549
      %v739 = vsel %vm395, %v499, %v550
      %v742 = vsel %vm395, %v507, %v551
      %v745 = vsel %vm395, %v515, %v552
      %v747 = vsel %vm408, %v736, %v578
      %v750 = vsel %vm408, %v739, %v579
      %v753 = vsel %vm408, %v742, %v580
      %v756 = vsel %vm408, %v745, %v581
      %v759 = vsel %vm421, %v578, %v602
      %v761 = vsel %vm421, %v579, %v603
      %v763 = vsel %vm421, %v580, %v604
      %v765 = vsel %vm421, %v581, %v605
      %v767 = vsel %vm430, %v759, %v631
      %v769 = vsel %vm430, %v761, %v632
      %v771 = vsel %vm430, %v763, %v633
      %v773 = vsel %vm430, %v765, %v634
      %v775 = vsel %vm439, %v767, %v660
      %v778 = vsel %vm439, %v769, %v661
      %v781 = vsel %vm439, %v771, %v662
      %v784 = vsel %vm439, %v773, %v663
      %v787 = vsel %vm452, %v660, %v684
      %v789 = vsel %vm452, %v661, %v685
      %v791 = vsel %vm452, %v662, %v686
      %v793 = vsel %vm452, %v663, %v687
      %v795 = vsel %vm461, %v787, %v713
      %v798 = vsel %vm461, %v789, %v714
      %v801 = vsel %vm461, %v791, %v715
      %v804 = vsel %vm461, %v793, %v716
      %v806 = vrot.slane %v480, 3
      %v807 = vrot.slane %v481, 3
      %v808 = vrot.slane %v482, 3
      %v809 = vrot.slane %v483, 3
      %810 = vrot.lane.b32.xlu0 %v480, 127
      %v811 = vpop.permute.xlu0 %810
      %812 = vrot.lane.b32.xlu0 %v481, 127
      %v813 = vpop.permute.xlu0 %812
      %814 = vrot.lane.b32.xlu0 %v482, 127
      %v815 = vpop.permute.xlu0 %814
      %816 = vrot.lane.b32.xlu0 %v483, 127
      %v817 = vpop.permute.xlu0 %816
      %818 = vrot.lane.b32.xlu0 %v518, 127
      %v819 = vpop.permute.xlu0 %818
      %v820 = vsel %vm260, %v811, %v813
      %v821 = vsel %vm260, %v813, %v815
      %v822 = vsel %vm260, %v815, %v817
      %v823 = vsel %vm260, %v817, %v819
      %v824 = vrot.slane %v480, 5
      %v825 = vrot.slane %v481, 5
      %v826 = vrot.slane %v482, 5
      %v827 = vrot.slane %v483, 5
      %v828 = vrot.slane %v518, 5
      %829 = vrot.lane.b32.xlu0 %v824, 126
      %v830 = vpop.permute.xlu0 %829
      %831 = vrot.lane.b32.xlu0 %v825, 126
      %v832 = vpop.permute.xlu0 %831
      %833 = vrot.lane.b32.xlu0 %v826, 126
      %v834 = vpop.permute.xlu0 %833
      %835 = vrot.lane.b32.xlu0 %v827, 126
      %v836 = vpop.permute.xlu0 %835
      %837 = vrot.lane.b32.xlu0 %v828, 126
      %v838 = vpop.permute.xlu0 %837
      %v839 = vsel %vm280, %v830, %v832
      %v840 = vsel %vm280, %v832, %v834
      %v841 = vsel %vm280, %v834, %v836
      %v842 = vsel %vm280, %v836, %v838
      %v843 = vrot.slane %v480, 2
      %v844 = vrot.slane %v481, 2
      %v845 = vrot.slane %v482, 2
      %v846 = vrot.slane %v483, 2
      %v847 = vrot.slane %v518, 2
      %848 = vrot.lane.b32.xlu0 %v843, 104
      %v849 = vpop.permute.xlu0 %848
      %850 = vrot.lane.b32.xlu0 %v844, 104
      %v851 = vpop.permute.xlu0 %850
      %852 = vrot.lane.b32.xlu0 %v845, 104
      %v853 = vpop.permute.xlu0 %852
      %854 = vrot.lane.b32.xlu0 %v846, 104
      %v855 = vpop.permute.xlu0 %854
      %856 = vrot.lane.b32.xlu0 %v847, 104
      %v857 = vpop.permute.xlu0 %856
      %v858 = vsel %vm300, %v849, %v851
      %v859 = vsel %vm300, %v851, %v853
      %v860 = vsel %vm300, %v853, %v855
      %v861 = vsel %vm300, %v855, %v857
      %v862 = vrot.slane %v480, 7
      %v863 = vrot.slane %v481, 7
      %v864 = vrot.slane %v482, 7
      %v865 = vrot.slane %v483, 7
      %v866 = vrot.slane %v518, 7
      %867 = vrot.lane.b32.xlu0 %v862, 103
      %v868 = vpop.permute.xlu0 %867
      %869 = vrot.lane.b32.xlu0 %v863, 103
      %v870 = vpop.permute.xlu0 %869
      %871 = vrot.lane.b32.xlu0 %v864, 103
      %v872 = vpop.permute.xlu0 %871
      %873 = vrot.lane.b32.xlu0 %v865, 103
      %v874 = vpop.permute.xlu0 %873
      %875 = vrot.lane.b32.xlu0 %v866, 103
      %v876 = vpop.permute.xlu0 %875
      %v877 = vsel %vm315, %v868, %v870
      %v878 = vsel %vm315, %v870, %v872
      %v879 = vsel %vm315, %v872, %v874
      %v880 = vsel %vm315, %v874, %v876
      %v881 = vpack.c.b16 %v476, %v476
      %v882 = vpack.c.b16 %v477, %v477
      %v883 = vpack.c.b16 %v478, %v478
      %v884 = vpack.c.b16 %v479, %v479
      %v885 = vpack.c.b16 %v517, %v517
      %886 = vrot.lane.b32.xlu0 %v238, 102
      %v887 = vpop.permute.xlu0 %886
      %888 = vrot.lane.b32.xlu0 %v239, 102
      %v889 = vpop.permute.xlu0 %888
      %890 = vrot.lane.b32.xlu0 %v240, 102
      %v891 = vpop.permute.xlu0 %890
      %892 = vrot.lane.b32.xlu0 %v241, 102
      %v893 = vpop.permute.xlu0 %892
      %894 = vrot.lane.b32.xlu0 %v244, 102
      %v895 = vpop.permute.xlu0 %894
      %896 = vrot.lane.b32.xlu0 %v881, 102
      %v897 = vpop.permute.xlu0 %896
      %898 = vrot.lane.b32.xlu0 %v882, 102
      %v899 = vpop.permute.xlu0 %898
      %900 = vrot.lane.b32.xlu0 %v883, 102
      %v901 = vpop.permute.xlu0 %900
      %902 = vrot.lane.b32.xlu0 %v884, 102
      %v903 = vpop.permute.xlu0 %902
      %904 = vrot.lane.b32.xlu0 %v885, 102
      %v905 = vpop.permute.xlu0 %904
      %v906 = vsel %vm335, %v887, %v889
      %v907 = vsel %vm335, %v889, %v891
      %v908 = vsel %vm335, %v891, %v893
      %v909 = vsel %vm335, %v893, %v895
      %v910 = vsel %vm335, %v897, %v899
      %v911 = vsel %vm335, %v899, %v901
      %v912 = vsel %vm335, %v901, %v903
      %v913 = vsel %vm335, %v903, %v905
      %v914 = vrot.slane %v480, 1
      %v915 = vrot.slane %v481, 1
      %v916 = vrot.slane %v482, 1
      %v917 = vrot.slane %v483, 1
      %v918 = vrot.slane %v518, 1
      %919 = vrot.lane.b32.xlu0 %v914, 80
      %v920 = vpop.permute.xlu0 %919
      %921 = vrot.lane.b32.xlu0 %v915, 80
      %v922 = vpop.permute.xlu0 %921
      %923 = vrot.lane.b32.xlu0 %v916, 80
      %v924 = vpop.permute.xlu0 %923
      %925 = vrot.lane.b32.xlu0 %v917, 80
      %v926 = vpop.permute.xlu0 %925
      %927 = vrot.lane.b32.xlu0 %v918, 80
      %v928 = vpop.permute.xlu0 %927
      %v929 = vsel %vm355, %v920, %v922
      %v930 = vsel %vm355, %v922, %v924
      %v931 = vsel %vm355, %v924, %v926
      %v932 = vsel %vm355, %v926, %v928
      %v933 = vrot.slane %v480, 6
      %v934 = vrot.slane %v481, 6
      %v935 = vrot.slane %v482, 6
      %v936 = vrot.slane %v483, 6
      %v937 = vrot.slane %v518, 6
      %938 = vrot.lane.b32.xlu0 %v933, 79
      %v939 = vpop.permute.xlu0 %938
      %940 = vrot.lane.b32.xlu0 %v934, 79
      %v941 = vpop.permute.xlu0 %940
      %942 = vrot.lane.b32.xlu0 %v935, 79
      %v943 = vpop.permute.xlu0 %942
      %944 = vrot.lane.b32.xlu0 %v936, 79
      %v945 = vpop.permute.xlu0 %944
      %946 = vrot.lane.b32.xlu0 %v937, 79
      %v947 = vpop.permute.xlu0 %946
      %v948 = vsel %vm375, %v939, %v941
      %v949 = vsel %vm375, %v941, %v943
      %v950 = vsel %vm375, %v943, %v945
      %v951 = vsel %vm375, %v945, %v947
      %v952 = vrot.slane %v518, 3
      %953 = vrot.lane.b32.xlu0 %v806, 78
      %v954 = vpop.permute.xlu0 %953
      %955 = vrot.lane.b32.xlu0 %v807, 78
      %v956 = vpop.permute.xlu0 %955
      %957 = vrot.lane.b32.xlu0 %v808, 78
      %v958 = vpop.permute.xlu0 %957
      %959 = vrot.lane.b32.xlu0 %v809, 78
      %v960 = vpop.permute.xlu0 %959
      %961 = vrot.lane.b32.xlu0 %v952, 78
      %v962 = vpop.permute.xlu0 %961
      %v963 = vsel %vm390, %v954, %v956
      %v964 = vsel %vm390, %v956, %v958
      %v965 = vsel %vm390, %v958, %v960
      %v966 = vsel %vm390, %v960, %v962
      %v969 = vsel %vm395, %v806, %v820
      %v972 = vsel %vm395, %v807, %v821
      %v975 = vsel %vm395, %v808, %v822
      %v978 = vsel %vm395, %v809, %v823
      %v980 = vsel %vm408, %v969, %v839
      %v983 = vsel %vm408, %v972, %v840
      %v986 = vsel %vm408, %v975, %v841
      %v989 = vsel %vm408, %v978, %v842
      %v992 = vsel %vm421, %v839, %v858
      %v994 = vsel %vm421, %v840, %v859
      %v996 = vsel %vm421, %v841, %v860
      %v998 = vsel %vm421, %v842, %v861
      %v1000 = vsel %vm430, %v992, %v877
      %v1002 = vsel %vm430, %v994, %v878
      %v1004 = vsel %vm430, %v996, %v879
      %v1006 = vsel %vm430, %v998, %v880
      %v1008 = vsel %vm439, %v1000, %v906
      %v1011 = vsel %vm439, %v1002, %v907
      %v1014 = vsel %vm439, %v1004, %v908
      %v1017 = vsel %vm439, %v1006, %v909
      %v1021 = vsel %vm452, %v910, %v929
      %v1024 = vsel %vm452, %v911, %v930
      %v1027 = vsel %vm452, %v912, %v931
      %v1030 = vsel %vm452, %v913, %v932
      %v1032 = vsel %vm461, %v1021, %v948
      %v1035 = vsel %vm461, %v1024, %v949
      %v1038 = vsel %vm461, %v1027, %v950
      %v1041 = vsel %vm461, %v1030, %v951
      %v1044 = vshrl.u32 %v881, 16
      %v1046 = vshll.u32 %v881, 16
      %v1048 = vrot.slane %v1046, 1
      %v1049 = vor.u32 %v1044, %v1048
      %v1051 = vshrl.u32 %v882, 16
      %v1053 = vshll.u32 %v882, 16
      %v1055 = vrot.slane %v1053, 1
      %v1056 = vor.u32 %v1051, %v1055
      %v1058 = vshrl.u32 %v883, 16
      %v1060 = vshll.u32 %v883, 16
      %v1062 = vrot.slane %v1060, 1
      %v1063 = vor.u32 %v1058, %v1062
      %v1065 = vshrl.u32 %v884, 16
      %v1067 = vshll.u32 %v884, 16
      %v1069 = vrot.slane %v1067, 1
      %v1070 = vor.u32 %v1065, %v1069
      %v1071 = vrot.slane %v1044, 5
      %v1072 = vrot.slane %v1046, 6
      %v1073 = vor.u32 %v1071, %v1072
      %v1074 = vrot.slane %v1051, 5
      %v1075 = vrot.slane %v1053, 6
      %v1076 = vor.u32 %v1074, %v1075
      %v1077 = vrot.slane %v1058, 5
      %v1078 = vrot.slane %v1060, 6
      %v1079 = vor.u32 %v1077, %v1078
      %v1080 = vrot.slane %v1065, 5
      %v1081 = vrot.slane %v1067, 6
      %v1082 = vor.u32 %v1080, %v1081
      %v1084 = vshrl.u32 %v885, 16
      %v1086 = vrot.slane %v1084, 5
      %v1087 = vshll.u32 %v885, 16
      %v1089 = vrot.slane %v1087, 6
      %v1090 = vor.u32 %v1086, %v1089
      %1091 = vrot.lane.b32.xlu0 %v1073, 127
      %v1092 = vpop.permute.xlu0 %1091
      %1093 = vrot.lane.b32.xlu0 %v1076, 127
      %v1094 = vpop.permute.xlu0 %1093
      %1095 = vrot.lane.b32.xlu0 %v1079, 127
      %v1096 = vpop.permute.xlu0 %1095
      %1097 = vrot.lane.b32.xlu0 %v1082, 127
      %v1098 = vpop.permute.xlu0 %1097
      %1099 = vrot.lane.b32.xlu0 %v1090, 127
      %v1100 = vpop.permute.xlu0 %1099
      %v1101 = vsel %vm260, %v1092, %v1094
      %v1102 = vsel %vm260, %v1094, %v1096
      %v1103 = vsel %vm260, %v1096, %v1098
      %v1104 = vsel %vm260, %v1098, %v1100
      %v1105 = vrot.slane %v1044, 2
      %v1106 = vrot.slane %v1046, 3
      %v1107 = vor.u32 %v1105, %v1106
      %v1108 = vrot.slane %v1051, 2
      %v1109 = vrot.slane %v1053, 3
      %v1110 = vor.u32 %v1108, %v1109
      %v1111 = vrot.slane %v1058, 2
      %v1112 = vrot.slane %v1060, 3
      %v1113 = vor.u32 %v1111, %v1112
      %v1114 = vrot.slane %v1065, 2
      %v1115 = vrot.slane %v1067, 3
      %v1116 = vor.u32 %v1114, %v1115
      %v1117 = vrot.slane %v1084, 2
      %v1118 = vrot.slane %v1087, 3
      %v1119 = vor.u32 %v1117, %v1118
      %1120 = vrot.lane.b32.xlu0 %v1107, 126
      %v1121 = vpop.permute.xlu0 %1120
      %1122 = vrot.lane.b32.xlu0 %v1110, 126
      %v1123 = vpop.permute.xlu0 %1122
      %1124 = vrot.lane.b32.xlu0 %v1113, 126
      %v1125 = vpop.permute.xlu0 %1124
      %1126 = vrot.lane.b32.xlu0 %v1116, 126
      %v1127 = vpop.permute.xlu0 %1126
      %1128 = vrot.lane.b32.xlu0 %v1119, 126
      %v1129 = vpop.permute.xlu0 %1128
      %v1130 = vsel %vm280, %v1121, %v1123
      %v1131 = vsel %vm280, %v1123, %v1125
      %v1132 = vsel %vm280, %v1125, %v1127
      %v1133 = vsel %vm280, %v1127, %v1129
      %v1134 = vrot.slane %v1044, 7
      %v1135 = vor.u32 %v1134, %v1046
      %v1136 = vrot.slane %v1051, 7
      %v1137 = vor.u32 %v1136, %v1053
      %v1138 = vrot.slane %v1058, 7
      %v1139 = vor.u32 %v1138, %v1060
      %v1140 = vrot.slane %v1065, 7
      %v1141 = vor.u32 %v1140, %v1067
      %v1142 = vrot.slane %v1084, 7
      %v1143 = vor.u32 %v1142, %v1087
      %1144 = vrot.lane.b32.xlu0 %v1135, 104
      %v1145 = vpop.permute.xlu0 %1144
      %1146 = vrot.lane.b32.xlu0 %v1137, 104
      %v1147 = vpop.permute.xlu0 %1146
      %1148 = vrot.lane.b32.xlu0 %v1139, 104
      %v1149 = vpop.permute.xlu0 %1148
      %1150 = vrot.lane.b32.xlu0 %v1141, 104
      %v1151 = vpop.permute.xlu0 %1150
      %1152 = vrot.lane.b32.xlu0 %v1143, 104
      %v1153 = vpop.permute.xlu0 %1152
      %v1154 = vsel %vm300, %v1145, %v1147
      %v1155 = vsel %vm300, %v1147, %v1149
      %v1156 = vsel %vm300, %v1149, %v1151
      %v1157 = vsel %vm300, %v1151, %v1153
      %v1158 = vrot.slane %v1044, 4
      %v1159 = vrot.slane %v1046, 5
      %v1160 = vor.u32 %v1158, %v1159
      %v1161 = vrot.slane %v1051, 4
      %v1162 = vrot.slane %v1053, 5
      %v1163 = vor.u32 %v1161, %v1162
      %v1164 = vrot.slane %v1058, 4
      %v1165 = vrot.slane %v1060, 5
      %v1166 = vor.u32 %v1164, %v1165
      %v1167 = vrot.slane %v1065, 4
      %v1168 = vrot.slane %v1067, 5
      %v1169 = vor.u32 %v1167, %v1168
      %v1170 = vrot.slane %v1084, 4
      %v1171 = vrot.slane %v1087, 5
      %v1172 = vor.u32 %v1170, %v1171
      %1173 = vrot.lane.b32.xlu0 %v1160, 103
      %v1174 = vpop.permute.xlu0 %1173
      %1175 = vrot.lane.b32.xlu0 %v1163, 103
      %v1176 = vpop.permute.xlu0 %1175
      %1177 = vrot.lane.b32.xlu0 %v1166, 103
      %v1178 = vpop.permute.xlu0 %1177
      %1179 = vrot.lane.b32.xlu0 %v1169, 103
      %v1180 = vpop.permute.xlu0 %1179
      %1181 = vrot.lane.b32.xlu0 %v1172, 103
      %v1182 = vpop.permute.xlu0 %1181
      %v1183 = vsel %vm315, %v1174, %v1176
      %v1184 = vsel %vm315, %v1176, %v1178
      %v1185 = vsel %vm315, %v1178, %v1180
      %v1186 = vsel %vm315, %v1180, %v1182
      %v1187 = vrot.slane %v1044, 1
      %v1188 = vrot.slane %v1046, 2
      %v1189 = vor.u32 %v1187, %v1188
      %v1190 = vrot.slane %v1051, 1
      %v1191 = vrot.slane %v1053, 2
      %v1192 = vor.u32 %v1190, %v1191
      %v1193 = vrot.slane %v1058, 1
      %v1194 = vrot.slane %v1060, 2
      %v1195 = vor.u32 %v1193, %v1194
      %v1196 = vrot.slane %v1065, 1
      %v1197 = vrot.slane %v1067, 2
      %v1198 = vor.u32 %v1196, %v1197
      %v1199 = vrot.slane %v1084, 1
      %v1200 = vrot.slane %v1087, 2
      %v1201 = vor.u32 %v1199, %v1200
      %1202 = vrot.lane.b32.xlu0 %v1189, 102
      %v1203 = vpop.permute.xlu0 %1202
      %1204 = vrot.lane.b32.xlu0 %v1192, 102
      %v1205 = vpop.permute.xlu0 %1204
      %1206 = vrot.lane.b32.xlu0 %v1195, 102
      %v1207 = vpop.permute.xlu0 %1206
      %1208 = vrot.lane.b32.xlu0 %v1198, 102
      %v1209 = vpop.permute.xlu0 %1208
      %1210 = vrot.lane.b32.xlu0 %v1201, 102
      %v1211 = vpop.permute.xlu0 %1210
      %v1212 = vsel %vm335, %v1203, %v1205
      %v1213 = vsel %vm335, %v1205, %v1207
      %v1214 = vsel %vm335, %v1207, %v1209
      %v1215 = vsel %vm335, %v1209, %v1211
      %v1216 = vrot.slane %v1044, 6
      %v1217 = vrot.slane %v1046, 7
      %v1218 = vor.u32 %v1216, %v1217
      %v1219 = vrot.slane %v1051, 6
      %v1220 = vrot.slane %v1053, 7
      %v1221 = vor.u32 %v1219, %v1220
      %v1222 = vrot.slane %v1058, 6
      %v1223 = vrot.slane %v1060, 7
      %v1224 = vor.u32 %v1222, %v1223
      %v1225 = vrot.slane %v1065, 6
      %v1226 = vrot.slane %v1067, 7
      %v1227 = vor.u32 %v1225, %v1226
      %v1228 = vrot.slane %v1084, 6
      %v1229 = vrot.slane %v1087, 7
      %v1230 = vor.u32 %v1228, %v1229
      %1231 = vrot.lane.b32.xlu0 %v1218, 80
      %v1232 = vpop.permute.xlu0 %1231
      %1233 = vrot.lane.b32.xlu0 %v1221, 80
      %v1234 = vpop.permute.xlu0 %1233
      %1235 = vrot.lane.b32.xlu0 %v1224, 80
      %v1236 = vpop.permute.xlu0 %1235
      %1237 = vrot.lane.b32.xlu0 %v1227, 80
      %v1238 = vpop.permute.xlu0 %1237
      %1239 = vrot.lane.b32.xlu0 %v1230, 80
      %v1240 = vpop.permute.xlu0 %1239
      %v1241 = vsel %vm355, %v1232, %v1234
      %v1242 = vsel %vm355, %v1234, %v1236
      %v1243 = vsel %vm355, %v1236, %v1238
      %v1244 = vsel %vm355, %v1238, %v1240
      %v1245 = vrot.slane %v1044, 3
      %v1246 = vrot.slane %v1046, 4
      %v1247 = vor.u32 %v1245, %v1246
      %v1248 = vrot.slane %v1051, 3
      %v1249 = vrot.slane %v1053, 4
      %v1250 = vor.u32 %v1248, %v1249
      %v1251 = vrot.slane %v1058, 3
      %v1252 = vrot.slane %v1060, 4
      %v1253 = vor.u32 %v1251, %v1252
      %v1254 = vrot.slane %v1065, 3
      %v1255 = vrot.slane %v1067, 4
      %v1256 = vor.u32 %v1254, %v1255
      %v1257 = vrot.slane %v1084, 3
      %v1258 = vrot.slane %v1087, 4
      %v1259 = vor.u32 %v1257, %v1258
      %1260 = vrot.lane.b32.xlu0 %v1247, 79
      %v1261 = vpop.permute.xlu0 %1260
      %1262 = vrot.lane.b32.xlu0 %v1250, 79
      %v1263 = vpop.permute.xlu0 %1262
      %1264 = vrot.lane.b32.xlu0 %v1253, 79
      %v1265 = vpop.permute.xlu0 %1264
      %1266 = vrot.lane.b32.xlu0 %v1256, 79
      %v1267 = vpop.permute.xlu0 %1266
      %1268 = vrot.lane.b32.xlu0 %v1259, 79
      %v1269 = vpop.permute.xlu0 %1268
      %v1270 = vsel %vm375, %v1261, %v1263
      %v1271 = vsel %vm375, %v1263, %v1265
      %v1272 = vsel %vm375, %v1265, %v1267
      %v1273 = vsel %vm375, %v1267, %v1269
      %v1274 = vrot.slane %v1087, 1
      %v1275 = vor.u32 %v1084, %v1274
      %1276 = vrot.lane.b32.xlu0 %v1049, 78
      %v1277 = vpop.permute.xlu0 %1276
      %1278 = vrot.lane.b32.xlu0 %v1056, 78
      %v1279 = vpop.permute.xlu0 %1278
      %1280 = vrot.lane.b32.xlu0 %v1063, 78
      %v1281 = vpop.permute.xlu0 %1280
      %1282 = vrot.lane.b32.xlu0 %v1070, 78
      %v1283 = vpop.permute.xlu0 %1282
      %1284 = vrot.lane.b32.xlu0 %v1275, 78
      %v1285 = vpop.permute.xlu0 %1284
      %v1286 = vsel %vm390, %v1277, %v1279
      %v1287 = vsel %vm390, %v1279, %v1281
      %v1288 = vsel %vm390, %v1281, %v1283
      %v1289 = vsel %vm390, %v1283, %v1285
      %v1292 = vsel %vm395, %v1049, %v1101
      %v1295 = vsel %vm395, %v1056, %v1102
      %v1298 = vsel %vm395, %v1063, %v1103
      %v1301 = vsel %vm395, %v1070, %v1104
      %v1303 = vsel %vm408, %v1292, %v1130
      %v1306 = vsel %vm408, %v1295, %v1131
      %v1309 = vsel %vm408, %v1298, %v1132
      %v1312 = vsel %vm408, %v1301, %v1133
      %v1315 = vsel %vm421, %v1130, %v1154
      %v1317 = vsel %vm421, %v1131, %v1155
      %v1319 = vsel %vm421, %v1132, %v1156
      %v1321 = vsel %vm421, %v1133, %v1157
      %v1323 = vsel %vm430, %v1315, %v1183
      %v1325 = vsel %vm430, %v1317, %v1184
      %v1327 = vsel %vm430, %v1319, %v1185
      %v1329 = vsel %vm430, %v1321, %v1186
      %v1331 = vsel %vm439, %v1323, %v1212
      %v1334 = vsel %vm439, %v1325, %v1213
      %v1337 = vsel %vm439, %v1327, %v1214
      %v1340 = vsel %vm439, %v1329, %v1215
      %v1343 = vsel %vm452, %v1212, %v1241
      %v1345 = vsel %vm452, %v1213, %v1242
      %v1347 = vsel %vm452, %v1214, %v1243
      %v1349 = vsel %vm452, %v1215, %v1244
      %v1351 = vsel %vm461, %v1343, %v1270
      %v1354 = vsel %vm461, %v1345, %v1271
      %v1357 = vsel %vm461, %v1347, %v1272
      %v1360 = vsel %vm461, %v1349, %v1273
      %v1362 = vld [vmem:[%s1] sm:$0xf]
      %v1363 = vld [vmem:[%s1 + $0x4] sm:$0xf]
      %v1364 = vld [vmem:[%s2] sm:$0xff]
      %v1365 = vld [vmem:[%s2 + $0x8] sm:$0xff]
      %1367 = vset.pattern.permute.xlu0 0
      %1368 = vperm.xlu0 %1367, %v1364
      %v1369 = vpop.permute.xlu0 %1368
      %1372 = vset.pattern.permute.xlu0 0
      %1373 = vperm.xlu0 %1372, %v1365
      %v1374 = vpop.permute.xlu0 %1373
      %v1378 = vunpack.c.l.b16 %v1362
      %v1379 = vunpack.c.l.b16 %v1363
      %v1380 = vpack.c.b16 %v1379, %v1378
      %vm1381 = vcmask 441344
      %v1383 = vsel %vm1381, %v1380, 0
      %v1386 = vsel %vm395, %v391, 0
      %v1389 = vsel %vm395, %v392, 0
      %v1392 = vsel %vm395, %v393, 0
      %v1395 = vsel %vm395, %v394, 0
      %v1398 = vsel %vm395, %v730, 0
      %v1401 = vsel %vm395, %v731, 0
      %v1404 = vsel %vm395, %v732, 0
      %v1407 = vsel %vm395, %v733, 0
      %v1410 = vsel %vm395, %v963, 0
      %v1413 = vsel %vm395, %v964, 0
      %v1416 = vsel %vm395, %v965, 0
      %v1419 = vsel %vm395, %v966, 0
      %v1422 = vsel %vm395, %v1286, 0
      %v1425 = vsel %vm395, %v1287, 0
      %v1428 = vsel %vm395, %v1288, 0
      %v1431 = vsel %vm395, %v1289, 0
      %1433 = vmatprep.subr.bf16.mxu0 0
      %1434 = vmatpush1.bf16.msra.mxu0 0
      %1435 = vmatprep.subr.bf16.mxu0 0
      %1436 = vmatpush1.bf16.msra.mxu0 0
      %1437 = vmatprep.subr.bf16.mxu0 0
      %1438 = vmatpush1.bf16.msra.mxu0 0
      %1439 = vmatprep.subr.bf16.mxu0 0
      %1440 = vmatpush1.bf16.msra.mxu0 0
      %1441 = vmatprep.subr.bf16.mxu0 %v1389
      %1442 = vmatpush1.bf16.msra.mxu0 %v1386
      %1443 = vmatprep.subr.bf16.mxu0 %v466
      %1444 = vmatpush1.bf16.msra.mxu0 %v463
      %1445 = vmatprep.subr.bf16.mxu0 %v444
      %1446 = vmatpush1.bf16.msra.mxu0 %v441
      %1447 = vmatprep.subr.bf16.mxu0 %v413
      %1448 = vmatpush1.bf16.msra.mxu0 %v410
      %1449 = vmatprep.subr.bf16.mxu0 0
      %1450 = vmatpush2.bf16.msra.mxu0 0
      %1451 = vmatprep.subr.bf16.mxu0 0
      %1452 = vmatpush2.bf16.msra.mxu0 0
      %1453 = vmatprep.subr.bf16.mxu0 0
      %1454 = vmatpush2.bf16.msra.mxu0 0
      %1455 = vmatprep.subr.bf16.mxu0 0
      %1456 = vmatpush2.bf16.msra.mxu0 0
      %1457 = vmatprep.subr.bf16.mxu0 0
      %1458 = vmatpush2.bf16.msra.mxu0 0
      %1459 = vmatprep.subr.bf16.mxu0 0
      %1460 = vmatpush2.bf16.msra.mxu0 0
      %1461 = vmatprep.subr.bf16.mxu0 0
      %1462 = vmatpush2.bf16.msra.mxu0 0
      %1463 = vmatprep.subr.bf16.mxu0 0
      %1464 = vmatpush2.bf16.msra.mxu0 0
      %1465 = vmatprep.mubr.bf16.mxu0 0
      %1466 = vmatmul.mubr.bf16.gmra.mxu0 %v1383
      %v1467 = vpop.f32.mrf.mxu0
      %v1468 = vadd.f32 %v1369, %v1467
      %v1469 = vpop.f32.mrf.mxu0
      %v1470 = vadd.f32 %v1369, %v1469
      %v1471 = vpop.f32.mrf.mxu0
      %v1472 = vadd.f32 %v1374, %v1471
      %v1473 = vpop.f32.mrf.mxu0
      %v1474 = vadd.f32 %v1374, %v1473
      %1475 = vdwg.mxu0
      %1476 = vmatprep.subr.bf16.mxu0 0
      %1477 = vmatpush1.bf16.msra.mxu0 0
      %1478 = vmatprep.subr.bf16.mxu0 0
      %1479 = vmatpush1.bf16.msra.mxu0 0
      %1480 = vmatprep.subr.bf16.mxu0 0
      %1481 = vmatpush1.bf16.msra.mxu0 0
      %1482 = vmatprep.subr.bf16.mxu0 0
      %1483 = vmatpush1.bf16.msra.mxu0 0
      %1484 = vmatprep.subr.bf16.mxu0 %v1395
      %1485 = vmatpush1.bf16.msra.mxu0 %v1392
      %1486 = vmatprep.subr.bf16.mxu0 %v472
      %1487 = vmatpush1.bf16.msra.mxu0 %v469
      %1488 = vmatprep.subr.bf16.mxu0 %v450
      %1489 = vmatpush1.bf16.msra.mxu0 %v447
      %1490 = vmatprep.subr.bf16.mxu0 %v419
      %1491 = vmatpush1.bf16.msra.mxu0 %v416
      %1492 = vmatprep.subr.bf16.mxu0 0
      %1493 = vmatpush2.bf16.msra.mxu0 0
      %1494 = vmatprep.subr.bf16.mxu0 0
      %1495 = vmatpush2.bf16.msra.mxu0 0
      %1496 = vmatprep.subr.bf16.mxu0 0
      %1497 = vmatpush2.bf16.msra.mxu0 0
      %1498 = vmatprep.subr.bf16.mxu0 0
      %1499 = vmatpush2.bf16.msra.mxu0 0
      %1500 = vmatprep.subr.bf16.mxu0 0
      %1501 = vmatpush2.bf16.msra.mxu0 0
      %1502 = vmatprep.subr.bf16.mxu0 0
      %1503 = vmatpush2.bf16.msra.mxu0 0
      %1504 = vmatprep.subr.bf16.mxu0 0
      %1505 = vmatpush2.bf16.msra.mxu0 0
      %1506 = vmatprep.subr.bf16.mxu0 0
      %1507 = vmatpush2.bf16.msra.mxu0 0
      %1508 = vmatprep.mubr.bf16.mxu0 0
      %1509 = vmatmul.mubr.bf16.gmra.mxu0 %v1383
      %v1510 = vpop.f32.mrf.mxu0
      %v1511 = vadd.f32 %v1369, %v1510
      %v1512 = vpop.f32.mrf.mxu0
      %v1513 = vadd.f32 %v1369, %v1512
      %v1514 = vpop.f32.mrf.mxu0
      %v1515 = vadd.f32 %v1374, %v1514
      %v1516 = vpop.f32.mrf.mxu0
      %v1517 = vadd.f32 %v1374, %v1516
      %1518 = vdwg.mxu0
      %1519 = vmatprep.subr.bf16.mxu0 0
      %1520 = vmatpush1.bf16.msra.mxu0 0
      %1521 = vmatprep.subr.bf16.mxu0 0
      %1522 = vmatpush1.bf16.msra.mxu0 0
      %1523 = vmatprep.subr.bf16.mxu0 0
      %1524 = vmatpush1.bf16.msra.mxu0 0
      %1525 = vmatprep.subr.bf16.mxu0 0
      %1526 = vmatpush1.bf16.msra.mxu0 0
      %1527 = vmatprep.subr.bf16.mxu0 %v1401
      %1528 = vmatpush1.bf16.msra.mxu0 %v1398
      %1529 = vmatprep.subr.bf16.mxu0 %v798
      %1530 = vmatpush1.bf16.msra.mxu0 %v795
      %1531 = vmatprep.subr.bf16.mxu0 %v778
      %1532 = vmatpush1.bf16.msra.mxu0 %v775
      %1533 = vmatprep.subr.bf16.mxu0 %v750
      %1534 = vmatpush1.bf16.msra.mxu0 %v747
      %1535 = vmatprep.subr.bf16.mxu0 0
      %1536 = vmatpush2.bf16.msra.mxu0 0
      %1537 = vmatprep.subr.bf16.mxu0 0
      %1538 = vmatpush2.bf16.msra.mxu0 0
      %1539 = vmatprep.subr.bf16.mxu0 0
      %1540 = vmatpush2.bf16.msra.mxu0 0
      %1541 = vmatprep.subr.bf16.mxu0 0
      %1542 = vmatpush2.bf16.msra.mxu0 0
      %1543 = vmatprep.subr.bf16.mxu0 0
      %1544 = vmatpush2.bf16.msra.mxu0 0
      %1545 = vmatprep.subr.bf16.mxu0 0
      %1546 = vmatpush2.bf16.msra.mxu0 0
      %1547 = vmatprep.subr.bf16.mxu0 0
      %1548 = vmatpush2.bf16.msra.mxu0 0
      %1549 = vmatprep.subr.bf16.mxu0 0
      %1550 = vmatpush2.bf16.msra.mxu0 0
      %1551 = vmatprep.mubr.bf16.mxu0 0
      %1552 = vmatmul.mubr.bf16.gmra.mxu0 %v1383
      %v1553 = vpop.f32.mrf.mxu0
      %v1554 = vadd.f32 %v1369, %v1553
      %v1555 = vpop.f32.mrf.mxu0
      %v1556 = vadd.f32 %v1369, %v1555
      %v1557 = vpop.f32.mrf.mxu0
      %v1558 = vadd.f32 %v1374, %v1557
      %v1559 = vpop.f32.mrf.mxu0
      %v1560 = vadd.f32 %v1374, %v1559
      %1561 = vdwg.mxu0
      %1562 = vmatprep.subr.bf16.mxu0 0
      %1563 = vmatpush1.bf16.msra.mxu0 0
      %1564 = vmatprep.subr.bf16.mxu0 0
      %1565 = vmatpush1.bf16.msra.mxu0 0
      %1566 = vmatprep.subr.bf16.mxu0 0
      %1567 = vmatpush1.bf16.msra.mxu0 0
      %1568 = vmatprep.subr.bf16.mxu0 0
      %1569 = vmatpush1.bf16.msra.mxu0 0
      %1570 = vmatprep.subr.bf16.mxu0 %v1407
      %1571 = vmatpush1.bf16.msra.mxu0 %v1404
      %1572 = vmatprep.subr.bf16.mxu0 %v804
      %1573 = vmatpush1.bf16.msra.mxu0 %v801
      %1574 = vmatprep.subr.bf16.mxu0 %v784
      %1575 = vmatpush1.bf16.msra.mxu0 %v781
      %1576 = vmatprep.subr.bf16.mxu0 %v756
      %1577 = vmatpush1.bf16.msra.mxu0 %v753
      %1578 = vmatprep.subr.bf16.mxu0 0
      %1579 = vmatpush2.bf16.msra.mxu0 0
      %1580 = vmatprep.subr.bf16.mxu0 0
      %1581 = vmatpush2.bf16.msra.mxu0 0
      %1582 = vmatprep.subr.bf16.mxu0 0
      %1583 = vmatpush2.bf16.msra.mxu0 0
      %1584 = vmatprep.subr.bf16.mxu0 0
      %1585 = vmatpush2.bf16.msra.mxu0 0
      %1586 = vmatprep.subr.bf16.mxu0 0
      %1587 = vmatpush2.bf16.msra.mxu0 0
      %1588 = vmatprep.subr.bf16.mxu0 0
      %1589 = vmatpush2.bf16.msra.mxu0 0
      %1590 = vmatprep.subr.bf16.mxu0 0
      %1591 = vmatpush2.bf16.msra.mxu0 0
      %1592 = vmatprep.subr.bf16.mxu0 0
      %1593 = vmatpush2.bf16.msra.mxu0 0
      %1594 = vmatprep.mubr.bf16.mxu0 0
      %1595 = vmatmul.mubr.bf16.gmra.mxu0 %v1383
      %v1596 = vpop.f32.mrf.mxu0
      %v1597 = vadd.f32 %v1369, %v1596
      %v1598 = vpop.f32.mrf.mxu0
      %v1599 = vadd.f32 %v1369, %v1598
      %v1600 = vpop.f32.mrf.mxu0
      %v1601 = vadd.f32 %v1374, %v1600
      %v1602 = vpop.f32.mrf.mxu0
      %v1603 = vadd.f32 %v1374, %v1602
      %1604 = vdwg.mxu0
      %1605 = vmatprep.subr.bf16.mxu0 0
      %1606 = vmatpush1.bf16.msra.mxu0 0
      %1607 = vmatprep.subr.bf16.mxu0 0
      %1608 = vmatpush1.bf16.msra.mxu0 0
      %1609 = vmatprep.subr.bf16.mxu0 0
      %1610 = vmatpush1.bf16.msra.mxu0 0
      %1611 = vmatprep.subr.bf16.mxu0 0
      %1612 = vmatpush1.bf16.msra.mxu0 0
      %1613 = vmatprep.subr.bf16.mxu0 %v1413
      %1614 = vmatpush1.bf16.msra.mxu0 %v1410
      %1615 = vmatprep.subr.bf16.mxu0 %v1035
      %1616 = vmatpush1.bf16.msra.mxu0 %v1032
      %1617 = vmatprep.subr.bf16.mxu0 %v1011
      %1618 = vmatpush1.bf16.msra.mxu0 %v1008
      %1619 = vmatprep.subr.bf16.mxu0 %v983
      %1620 = vmatpush1.bf16.msra.mxu0 %v980
      %1621 = vmatprep.subr.bf16.mxu0 0
      %1622 = vmatpush2.bf16.msra.mxu0 0
      %1623 = vmatprep.subr.bf16.mxu0 0
      %1624 = vmatpush2.bf16.msra.mxu0 0
      %1625 = vmatprep.subr.bf16.mxu0 0
      %1626 = vmatpush2.bf16.msra.mxu0 0
      %1627 = vmatprep.subr.bf16.mxu0 0
      %1628 = vmatpush2.bf16.msra.mxu0 0
      %1629 = vmatprep.subr.bf16.mxu0 0
      %1630 = vmatpush2.bf16.msra.mxu0 0
      %1631 = vmatprep.subr.bf16.mxu0 0
      %1632 = vmatpush2.bf16.msra.mxu0 0
      %1633 = vmatprep.subr.bf16.mxu0 0
      %1634 = vmatpush2.bf16.msra.mxu0 0
      %1635 = vmatprep.subr.bf16.mxu0 0
      %1636 = vmatpush2.bf16.msra.mxu0 0
      %1637 = vmatprep.mubr.bf16.mxu0 0
      %1638 = vmatmul.mubr.bf16.gmra.mxu0 %v1383
      %v1639 = vpop.f32.mrf.mxu0
      %v1640 = vadd.f32 %v1369, %v1639
      %v1641 = vpop.f32.mrf.mxu0
      %v1642 = vadd.f32 %v1369, %v1641
      %v1643 = vpop.f32.mrf.mxu0
      %v1644 = vadd.f32 %v1374, %v1643
      %v1645 = vpop.f32.mrf.mxu0
      %v1646 = vadd.f32 %v1374, %v1645
      %1647 = vdwg.mxu0
      %1648 = vmatprep.subr.bf16.mxu0 0
      %1649 = vmatpush1.bf16.msra.mxu0 0
      %1650 = vmatprep.subr.bf16.mxu0 0
      %1651 = vmatpush1.bf16.msra.mxu0 0
      %1652 = vmatprep.subr.bf16.mxu0 0
      %1653 = vmatpush1.bf16.msra.mxu0 0
      %1654 = vmatprep.subr.bf16.mxu0 0
      %1655 = vmatpush1.bf16.msra.mxu0 0
      %1656 = vmatprep.subr.bf16.mxu0 %v1419
      %1657 = vmatpush1.bf16.msra.mxu0 %v1416
      %1658 = vmatprep.subr.bf16.mxu0 %v1041
      %1659 = vmatpush1.bf16.msra.mxu0 %v1038
      %1660 = vmatprep.subr.bf16.mxu0 %v1017
      %1661 = vmatpush1.bf16.msra.mxu0 %v1014
      %1662 = vmatprep.subr.bf16.mxu0 %v989
      %1663 = vmatpush1.bf16.msra.mxu0 %v986
      %1664 = vmatprep.subr.bf16.mxu0 0
      %1665 = vmatpush2.bf16.msra.mxu0 0
      %1666 = vmatprep.subr.bf16.mxu0 0
      %1667 = vmatpush2.bf16.msra.mxu0 0
      %1668 = vmatprep.subr.bf16.mxu0 0
      %1669 = vmatpush2.bf16.msra.mxu0 0
      %1670 = vmatprep.subr.bf16.mxu0 0
      %1671 = vmatpush2.bf16.msra.mxu0 0
      %1672 = vmatprep.subr.bf16.mxu0 0
      %1673 = vmatpush2.bf16.msra.mxu0 0
      %1674 = vmatprep.subr.bf16.mxu0 0
      %1675 = vmatpush2.bf16.msra.mxu0 0
      %1676 = vmatprep.subr.bf16.mxu0 0
      %1677 = vmatpush2.bf16.msra.mxu0 0
      %1678 = vmatprep.subr.bf16.mxu0 0
      %1679 = vmatpush2.bf16.msra.mxu0 0
      %1680 = vmatprep.mubr.bf16.mxu0 0
      %1681 = vmatmul.mubr.bf16.gmra.mxu0 %v1383
      %v1682 = vpop.f32.mrf.mxu0
      %v1683 = vadd.f32 %v1369, %v1682
      %v1684 = vpop.f32.mrf.mxu0
      %v1685 = vadd.f32 %v1369, %v1684
      %v1686 = vpop.f32.mrf.mxu0
      %v1687 = vadd.f32 %v1374, %v1686
      %v1688 = vpop.f32.mrf.mxu0
      %v1689 = vadd.f32 %v1374, %v1688
      %1690 = vdwg.mxu0
      %1691 = vmatprep.subr.bf16.mxu0 0
      %1692 = vmatpush1.bf16.msra.mxu0 0
      %1693 = vmatprep.subr.bf16.mxu0 0
      %1694 = vmatpush1.bf16.msra.mxu0 0
      %1695 = vmatprep.subr.bf16.mxu0 0
      %1696 = vmatpush1.bf16.msra.mxu0 0
      %1697 = vmatprep.subr.bf16.mxu0 0
      %1698 = vmatpush1.bf16.msra.mxu0 0
      %1699 = vmatprep.subr.bf16.mxu0 %v1425
      %1700 = vmatpush1.bf16.msra.mxu0 %v1422
      %1701 = vmatprep.subr.bf16.mxu0 %v1354
      %1702 = vmatpush1.bf16.msra.mxu0 %v1351
      %1703 = vmatprep.subr.bf16.mxu0 %v1334
      %1704 = vmatpush1.bf16.msra.mxu0 %v1331
      %1705 = vmatprep.subr.bf16.mxu0 %v1306
      %1706 = vmatpush1.bf16.msra.mxu0 %v1303
      %1707 = vmatprep.subr.bf16.mxu0 0
      %1708 = vmatpush2.bf16.msra.mxu0 0
      %1709 = vmatprep.subr.bf16.mxu0 0
      %1710 = vmatpush2.bf16.msra.mxu0 0
      %1711 = vmatprep.subr.bf16.mxu0 0
      %1712 = vmatpush2.bf16.msra.mxu0 0
      %1713 = vmatprep.subr.bf16.mxu0 0
      %1714 = vmatpush2.bf16.msra.mxu0 0
      %1715 = vmatprep.subr.bf16.mxu0 0
      %1716 = vmatpush2.bf16.msra.mxu0 0
      %1717 = vmatprep.subr.bf16.mxu0 0
      %1718 = vmatpush2.bf16.msra.mxu0 0
      %1719 = vmatprep.subr.bf16.mxu0 0
      %1720 = vmatpush2.bf16.msra.mxu0 0
      %1721 = vmatprep.subr.bf16.mxu0 0
      %1722 = vmatpush2.bf16.msra.mxu0 0
      %1723 = vmatprep.mubr.bf16.mxu0 0
      %1724 = vmatmul.mubr.bf16.gmra.mxu0 %v1383
      %v1725 = vpop.f32.mrf.mxu0
      %v1726 = vadd.f32 %v1369, %v1725
      %v1727 = vpop.f32.mrf.mxu0
      %v1728 = vadd.f32 %v1369, %v1727
      %v1729 = vpop.f32.mrf.mxu0
      %v1730 = vadd.f32 %v1374, %v1729
      %v1731 = vpop.f32.mrf.mxu0
      %v1732 = vadd.f32 %v1374, %v1731
      %1733 = vdwg.mxu0
      %1734 = vmatprep.subr.bf16.mxu0 0
      %1735 = vmatpush1.bf16.msra.mxu0 0
      %1736 = vmatprep.subr.bf16.mxu0 0
      %1737 = vmatpush1.bf16.msra.mxu0 0
      %1738 = vmatprep.subr.bf16.mxu0 0
      %1739 = vmatpush1.bf16.msra.mxu0 0
      %1740 = vmatprep.subr.bf16.mxu0 0
      %1741 = vmatpush1.bf16.msra.mxu0 0
      %1742 = vmatprep.subr.bf16.mxu0 %v1431
      %1743 = vmatpush1.bf16.msra.mxu0 %v1428
      %1744 = vmatprep.subr.bf16.mxu0 %v1360
      %1745 = vmatpush1.bf16.msra.mxu0 %v1357
      %1746 = vmatprep.subr.bf16.mxu0 %v1340
      %1747 = vmatpush1.bf16.msra.mxu0 %v1337
      %1748 = vmatprep.subr.bf16.mxu0 %v1312
      %1749 = vmatpush1.bf16.msra.mxu0 %v1309
      %1750 = vmatprep.subr.bf16.mxu0 0
      %1751 = vmatpush2.bf16.msra.mxu0 0
      %1752 = vmatprep.subr.bf16.mxu0 0
      %1753 = vmatpush2.bf16.msra.mxu0 0
      %1754 = vmatprep.subr.bf16.mxu0 0
      %1755 = vmatpush2.bf16.msra.mxu0 0
      %1756 = vmatprep.subr.bf16.mxu0 0
      %1757 = vmatpush2.bf16.msra.mxu0 0
      %1758 = vmatprep.subr.bf16.mxu0 0
      %1759 = vmatpush2.bf16.msra.mxu0 0
      %1760 = vmatprep.subr.bf16.mxu0 0
      %1761 = vmatpush2.bf16.msra.mxu0 0
      %1762 = vmatprep.subr.bf16.mxu0 0
      %1763 = vmatpush2.bf16.msra.mxu0 0
      %1764 = vmatprep.subr.bf16.mxu0 0
      %1765 = vmatpush2.bf16.msra.mxu0 0
      %1766 = vmatprep.mubr.bf16.mxu0 0
      %1767 = vmatmul.mubr.bf16.gmra.mxu0 %v1383
      %v1768 = vpop.f32.mrf.mxu0
      %v1769 = vadd.f32 %v1369, %v1768
      %v1770 = vpop.f32.mrf.mxu0
      %v1771 = vadd.f32 %v1369, %v1770
      %v1772 = vpop.f32.mrf.mxu0
      %v1773 = vadd.f32 %v1374, %v1772
      %v1774 = vpop.f32.mrf.mxu0
      %v1775 = vadd.f32 %v1374, %v1774
      %1776 = vdwg.mxu0
      %v1777 = vmax.f32 %v1468, 0.0
      %v1778 = vmax.f32 %v1470, 0.0
      %v1779 = vmax.f32 %v1511, 0.0
      %v1780 = vmax.f32 %v1513, 0.0
      %v1781 = vmax.f32 %v1554, 0.0
      %v1782 = vmax.f32 %v1556, 0.0
      %v1783 = vmax.f32 %v1597, 0.0
      %v1784 = vmax.f32 %v1599, 0.0
      %v1785 = vmax.f32 %v1640, 0.0
      %v1786 = vmax.f32 %v1642, 0.0
      %v1787 = vmax.f32 %v1683, 0.0
      %v1788 = vmax.f32 %v1685, 0.0
      %v1789 = vmax.f32 %v1726, 0.0
      %v1790 = vmax.f32 %v1728, 0.0
      %v1791 = vmax.f32 %v1769, 0.0
      %v1792 = vmax.f32 %v1771, 0.0
      %v1793 = vmax.f32 %v1472, 0.0
      %v1794 = vmax.f32 %v1474, 0.0
      %v1795 = vmax.f32 %v1515, 0.0
      %v1796 = vmax.f32 %v1517, 0.0
      %v1797 = vmax.f32 %v1558, 0.0
      %v1798 = vmax.f32 %v1560, 0.0
      %v1799 = vmax.f32 %v1601, 0.0
      %v1800 = vmax.f32 %v1603, 0.0
      %v1801 = vmax.f32 %v1644, 0.0
      %v1802 = vmax.f32 %v1646, 0.0
      %v1803 = vmax.f32 %v1687, 0.0
      %v1804 = vmax.f32 %v1689, 0.0
      %v1805 = vmax.f32 %v1730, 0.0
      %v1806 = vmax.f32 %v1732, 0.0
      %v1807 = vmax.f32 %v1773, 0.0
      %v1808 = vmax.f32 %v1775, 0.0
      %v1809 = vpack.c.bf16 %v1793, %v1777
      %v1810 = vpack.c.bf16 %v1794, %v1778
      %v1811 = vpack.c.bf16 %v1795, %v1779
      %v1812 = vpack.c.bf16 %v1796, %v1780
      %v1813 = vpack.c.bf16 %v1797, %v1781
      %v1814 = vpack.c.bf16 %v1798, %v1782
      %v1815 = vpack.c.bf16 %v1799, %v1783
      %v1816 = vpack.c.bf16 %v1800, %v1784
      %v1817 = vpack.c.bf16 %v1801, %v1785
      %v1818 = vpack.c.bf16 %v1802, %v1786
      %v1819 = vpack.c.bf16 %v1803, %v1787
      %v1820 = vpack.c.bf16 %v1804, %v1788
      %v1821 = vpack.c.bf16 %v1805, %v1789
      %v1822 = vpack.c.bf16 %v1806, %v1790
      %v1823 = vpack.c.bf16 %v1807, %v1791
      %v1824 = vpack.c.bf16 %v1808, %v1792
      %1829 = vrot.lane.b32.xlu0 %v1809, 127
      %v1830 = vpop.permute.xlu0 %1829
      %1831 = vrot.lane.b32.xlu0 %v1810, 127
      %v1832 = vpop.permute.xlu0 %1831
      %1833 = vrot.lane.b32.xlu0 %v1811, 127
      %v1834 = vpop.permute.xlu0 %1833
      %1835 = vrot.lane.b32.xlu0 %v1812, 127
      %v1836 = vpop.permute.xlu0 %1835
      %v1837 = vsel %vm260, %v1830, %v1832
      %v1838 = vsel %vm260, %v1832, %v1834
      %v1839 = vsel %vm260, %v1834, %v1836
      %1843 = vrot.lane.b32.xlu0 %v1809, 126
      %v1844 = vpop.permute.xlu0 %1843
      %1845 = vrot.lane.b32.xlu0 %v1810, 126
      %v1846 = vpop.permute.xlu0 %1845
      %1847 = vrot.lane.b32.xlu0 %v1811, 126
      %v1848 = vpop.permute.xlu0 %1847
      %1849 = vrot.lane.b32.xlu0 %v1812, 126
      %v1850 = vpop.permute.xlu0 %1849
      %v1851 = vsel %vm280, %v1844, %v1846
      %v1852 = vsel %vm280, %v1846, %v1848
      %v1853 = vsel %vm280, %v1848, %v1850
      %1857 = vrot.lane.b32.xlu0 %v1809, 104
      %v1858 = vpop.permute.xlu0 %1857
      %1859 = vrot.lane.b32.xlu0 %v1810, 104
      %v1860 = vpop.permute.xlu0 %1859
      %1861 = vrot.lane.b32.xlu0 %v1811, 104
      %v1862 = vpop.permute.xlu0 %1861
      %1863 = vrot.lane.b32.xlu0 %v1812, 104
      %v1864 = vpop.permute.xlu0 %1863
      %v1865 = vsel %vm300, %v1858, %v1860
      %v1866 = vsel %vm300, %v1860, %v1862
      %v1867 = vsel %vm300, %v1862, %v1864
      %1871 = vrot.lane.b32.xlu0 %v1809, 103
      %v1872 = vpop.permute.xlu0 %1871
      %1873 = vrot.lane.b32.xlu0 %v1810, 103
      %v1874 = vpop.permute.xlu0 %1873
      %1875 = vrot.lane.b32.xlu0 %v1811, 103
      %v1876 = vpop.permute.xlu0 %1875
      %1877 = vrot.lane.b32.xlu0 %v1812, 103
      %v1878 = vpop.permute.xlu0 %1877
      %v1879 = vsel %vm315, %v1872, %v1874
      %v1880 = vsel %vm315, %v1874, %v1876
      %v1881 = vsel %vm315, %v1876, %v1878
      %1885 = vrot.lane.b32.xlu0 %v1809, 102
      %v1886 = vpop.permute.xlu0 %1885
      %1887 = vrot.lane.b32.xlu0 %v1810, 102
      %v1888 = vpop.permute.xlu0 %1887
      %1889 = vrot.lane.b32.xlu0 %v1811, 102
      %v1890 = vpop.permute.xlu0 %1889
      %1891 = vrot.lane.b32.xlu0 %v1812, 102
      %v1892 = vpop.permute.xlu0 %1891
      %v1893 = vsel %vm335, %v1886, %v1888
      %v1894 = vsel %vm335, %v1888, %v1890
      %v1895 = vsel %vm335, %v1890, %v1892
      %1899 = vrot.lane.b32.xlu0 %v1809, 80
      %v1900 = vpop.permute.xlu0 %1899
      %1901 = vrot.lane.b32.xlu0 %v1810, 80
      %v1902 = vpop.permute.xlu0 %1901
      %1903 = vrot.lane.b32.xlu0 %v1811, 80
      %v1904 = vpop.permute.xlu0 %1903
      %1905 = vrot.lane.b32.xlu0 %v1812, 80
      %v1906 = vpop.permute.xlu0 %1905
      %v1907 = vsel %vm355, %v1900, %v1902
      %v1908 = vsel %vm355, %v1902, %v1904
      %v1909 = vsel %vm355, %v1904, %v1906
      %1913 = vrot.lane.b32.xlu0 %v1809, 79
      %v1914 = vpop.permute.xlu0 %1913
      %1915 = vrot.lane.b32.xlu0 %v1810, 79
      %v1916 = vpop.permute.xlu0 %1915
      %1917 = vrot.lane.b32.xlu0 %v1811, 79
      %v1918 = vpop.permute.xlu0 %1917
      %1919 = vrot.lane.b32.xlu0 %v1812, 79
      %v1920 = vpop.permute.xlu0 %1919
      %v1921 = vsel %vm375, %v1914, %v1916
      %v1922 = vsel %vm375, %v1916, %v1918
      %v1923 = vsel %vm375, %v1918, %v1920
      %1927 = vrot.lane.b32.xlu0 %v1809, 78
      %v1928 = vpop.permute.xlu0 %1927
      %1929 = vrot.lane.b32.xlu0 %v1810, 78
      %v1930 = vpop.permute.xlu0 %1929
      %1931 = vrot.lane.b32.xlu0 %v1811, 78
      %v1932 = vpop.permute.xlu0 %1931
      %1933 = vrot.lane.b32.xlu0 %v1812, 78
      %v1934 = vpop.permute.xlu0 %1933
      %v1935 = vsel %vm390, %v1928, %v1930
      %v1936 = vsel %vm390, %v1930, %v1932
      %v1937 = vsel %vm390, %v1932, %v1934
      %1945 = vrot.lane.b32.xlu0 %v1813, 127
      %v1946 = vpop.permute.xlu0 %1945
      %1947 = vrot.lane.b32.xlu0 %v1814, 127
      %v1948 = vpop.permute.xlu0 %1947
      %1949 = vrot.lane.b32.xlu0 %v1815, 127
      %v1950 = vpop.permute.xlu0 %1949
      %1951 = vrot.lane.b32.xlu0 %v1816, 127
      %v1952 = vpop.permute.xlu0 %1951
      %v1953 = vsel %vm260, %v1946, %v1948
      %v1954 = vsel %vm260, %v1948, %v1950
      %v1955 = vsel %vm260, %v1950, %v1952
      %1959 = vrot.lane.b32.xlu0 %v1813, 126
      %v1960 = vpop.permute.xlu0 %1959
      %1961 = vrot.lane.b32.xlu0 %v1814, 126
      %v1962 = vpop.permute.xlu0 %1961
      %1963 = vrot.lane.b32.xlu0 %v1815, 126
      %v1964 = vpop.permute.xlu0 %1963
      %1965 = vrot.lane.b32.xlu0 %v1816, 126
      %v1966 = vpop.permute.xlu0 %1965
      %v1967 = vsel %vm280, %v1960, %v1962
      %v1968 = vsel %vm280, %v1962, %v1964
      %v1969 = vsel %vm280, %v1964, %v1966
      %1973 = vrot.lane.b32.xlu0 %v1813, 104
      %v1974 = vpop.permute.xlu0 %1973
      %1975 = vrot.lane.b32.xlu0 %v1814, 104
      %v1976 = vpop.permute.xlu0 %1975
      %1977 = vrot.lane.b32.xlu0 %v1815, 104
      %v1978 = vpop.permute.xlu0 %1977
      %1979 = vrot.lane.b32.xlu0 %v1816, 104
      %v1980 = vpop.permute.xlu0 %1979
      %v1981 = vsel %vm300, %v1974, %v1976
      %v1982 = vsel %vm300, %v1976, %v1978
      %v1983 = vsel %vm300, %v1978, %v1980
      %1987 = vrot.lane.b32.xlu0 %v1813, 103
      %v1988 = vpop.permute.xlu0 %1987
      %1989 = vrot.lane.b32.xlu0 %v1814, 103
      %v1990 = vpop.permute.xlu0 %1989
      %1991 = vrot.lane.b32.xlu0 %v1815, 103
      %v1992 = vpop.permute.xlu0 %1991
      %1993 = vrot.lane.b32.xlu0 %v1816, 103
      %v1994 = vpop.permute.xlu0 %1993
      %v1995 = vsel %vm315, %v1988, %v1990
      %v1996 = vsel %vm315, %v1990, %v1992
      %v1997 = vsel %vm315, %v1992, %v1994
      %2001 = vrot.lane.b32.xlu0 %v1813, 102
      %v2002 = vpop.permute.xlu0 %2001
      %2003 = vrot.lane.b32.xlu0 %v1814, 102
      %v2004 = vpop.permute.xlu0 %2003
      %2005 = vrot.lane.b32.xlu0 %v1815, 102
      %v2006 = vpop.permute.xlu0 %2005
      %2007 = vrot.lane.b32.xlu0 %v1816, 102
      %v2008 = vpop.permute.xlu0 %2007
      %v2009 = vsel %vm335, %v2002, %v2004
      %v2010 = vsel %vm335, %v2004, %v2006
      %v2011 = vsel %vm335, %v2006, %v2008
      %2015 = vrot.lane.b32.xlu0 %v1813, 80
      %v2016 = vpop.permute.xlu0 %2015
      %2017 = vrot.lane.b32.xlu0 %v1814, 80
      %v2018 = vpop.permute.xlu0 %2017
      %2019 = vrot.lane.b32.xlu0 %v1815, 80
      %v2020 = vpop.permute.xlu0 %2019
      %2021 = vrot.lane.b32.xlu0 %v1816, 80
      %v2022 = vpop.permute.xlu0 %2021
      %v2023 = vsel %vm355, %v2016, %v2018
      %v2024 = vsel %vm355, %v2018, %v2020
      %v2025 = vsel %vm355, %v2020, %v2022
      %2029 = vrot.lane.b32.xlu0 %v1813, 79
      %v2030 = vpop.permute.xlu0 %2029
      %2031 = vrot.lane.b32.xlu0 %v1814, 79
      %v2032 = vpop.permute.xlu0 %2031
      %2033 = vrot.lane.b32.xlu0 %v1815, 79
      %v2034 = vpop.permute.xlu0 %2033
      %2035 = vrot.lane.b32.xlu0 %v1816, 79
      %v2036 = vpop.permute.xlu0 %2035
      %v2037 = vsel %vm375, %v2030, %v2032
      %v2038 = vsel %vm375, %v2032, %v2034
      %v2039 = vsel %vm375, %v2034, %v2036
      %2043 = vrot.lane.b32.xlu0 %v1813, 78
      %v2044 = vpop.permute.xlu0 %2043
      %2045 = vrot.lane.b32.xlu0 %v1814, 78
      %v2046 = vpop.permute.xlu0 %2045
      %2047 = vrot.lane.b32.xlu0 %v1815, 78
      %v2048 = vpop.permute.xlu0 %2047
      %2049 = vrot.lane.b32.xlu0 %v1816, 78
      %v2050 = vpop.permute.xlu0 %2049
      %v2051 = vsel %vm390, %v2044, %v2046
      %v2052 = vsel %vm390, %v2046, %v2048
      %v2053 = vsel %vm390, %v2048, %v2050
      %2061 = vrot.lane.b32.xlu0 %v1817, 127
      %v2062 = vpop.permute.xlu0 %2061
      %2063 = vrot.lane.b32.xlu0 %v1818, 127
      %v2064 = vpop.permute.xlu0 %2063
      %2065 = vrot.lane.b32.xlu0 %v1819, 127
      %v2066 = vpop.permute.xlu0 %2065
      %2067 = vrot.lane.b32.xlu0 %v1820, 127
      %v2068 = vpop.permute.xlu0 %2067
      %v2069 = vsel %vm260, %v2062, %v2064
      %v2070 = vsel %vm260, %v2064, %v2066
      %v2071 = vsel %vm260, %v2066, %v2068
      %2075 = vrot.lane.b32.xlu0 %v1817, 126
      %v2076 = vpop.permute.xlu0 %2075
      %2077 = vrot.lane.b32.xlu0 %v1818, 126
      %v2078 = vpop.permute.xlu0 %2077
      %2079 = vrot.lane.b32.xlu0 %v1819, 126
      %v2080 = vpop.permute.xlu0 %2079
      %2081 = vrot.lane.b32.xlu0 %v1820, 126
      %v2082 = vpop.permute.xlu0 %2081
      %v2083 = vsel %vm280, %v2076, %v2078
      %v2084 = vsel %vm280, %v2078, %v2080
      %v2085 = vsel %vm280, %v2080, %v2082
      %2089 = vrot.lane.b32.xlu0 %v1817, 104
      %v2090 = vpop.permute.xlu0 %2089
      %2091 = vrot.lane.b32.xlu0 %v1818, 104
      %v2092 = vpop.permute.xlu0 %2091
      %2093 = vrot.lane.b32.xlu0 %v1819, 104
      %v2094 = vpop.permute.xlu0 %2093
      %2095 = vrot.lane.b32.xlu0 %v1820, 104
      %v2096 = vpop.permute.xlu0 %2095
      %v2097 = vsel %vm300, %v2090, %v2092
      %v2098 = vsel %vm300, %v2092, %v2094
      %v2099 = vsel %vm300, %v2094, %v2096
      %2103 = vrot.lane.b32.xlu0 %v1817, 103
      %v2104 = vpop.permute.xlu0 %2103
      %2105 = vrot.lane.b32.xlu0 %v1818, 103
      %v2106 = vpop.permute.xlu0 %2105
      %2107 = vrot.lane.b32.xlu0 %v1819, 103
      %v2108 = vpop.permute.xlu0 %2107
      %2109 = vrot.lane.b32.xlu0 %v1820, 103
      %v2110 = vpop.permute.xlu0 %2109
      %v2111 = vsel %vm315, %v2104, %v2106
      %v2112 = vsel %vm315, %v2106, %v2108
      %v2113 = vsel %vm315, %v2108, %v2110
      %2117 = vrot.lane.b32.xlu0 %v1817, 102
      %v2118 = vpop.permute.xlu0 %2117
      %2119 = vrot.lane.b32.xlu0 %v1818, 102
      %v2120 = vpop.permute.xlu0 %2119
      %2121 = vrot.lane.b32.xlu0 %v1819, 102
      %v2122 = vpop.permute.xlu0 %2121
      %2123 = vrot.lane.b32.xlu0 %v1820, 102
      %v2124 = vpop.permute.xlu0 %2123
      %v2125 = vsel %vm335, %v2118, %v2120
      %v2126 = vsel %vm335, %v2120, %v2122
      %v2127 = vsel %vm335, %v2122, %v2124
      %2131 = vrot.lane.b32.xlu0 %v1817, 80
      %v2132 = vpop.permute.xlu0 %2131
      %2133 = vrot.lane.b32.xlu0 %v1818, 80
      %v2134 = vpop.permute.xlu0 %2133
      %2135 = vrot.lane.b32.xlu0 %v1819, 80
      %v2136 = vpop.permute.xlu0 %2135
      %2137 = vrot.lane.b32.xlu0 %v1820, 80
      %v2138 = vpop.permute.xlu0 %2137
      %v2139 = vsel %vm355, %v2132, %v2134
      %v2140 = vsel %vm355, %v2134, %v2136
      %v2141 = vsel %vm355, %v2136, %v2138
      %2145 = vrot.lane.b32.xlu0 %v1817, 79
      %v2146 = vpop.permute.xlu0 %2145
      %2147 = vrot.lane.b32.xlu0 %v1818, 79
      %v2148 = vpop.permute.xlu0 %2147
      %2149 = vrot.lane.b32.xlu0 %v1819, 79
      %v2150 = vpop.permute.xlu0 %2149
      %2151 = vrot.lane.b32.xlu0 %v1820, 79
      %v2152 = vpop.permute.xlu0 %2151
      %v2153 = vsel %vm375, %v2146, %v2148
      %v2154 = vsel %vm375, %v2148, %v2150
      %v2155 = vsel %vm375, %v2150, %v2152
      %2159 = vrot.lane.b32.xlu0 %v1817, 78
      %v2160 = vpop.permute.xlu0 %2159
      %2161 = vrot.lane.b32.xlu0 %v1818, 78
      %v2162 = vpop.permute.xlu0 %2161
      %2163 = vrot.lane.b32.xlu0 %v1819, 78
      %v2164 = vpop.permute.xlu0 %2163
      %2165 = vrot.lane.b32.xlu0 %v1820, 78
      %v2166 = vpop.permute.xlu0 %2165
      %v2167 = vsel %vm390, %v2160, %v2162
      %v2168 = vsel %vm390, %v2162, %v2164
      %v2169 = vsel %vm390, %v2164, %v2166
      %2177 = vrot.lane.b32.xlu0 %v1821, 127
      %v2178 = vpop.permute.xlu0 %2177
      %2179 = vrot.lane.b32.xlu0 %v1822, 127
      %v2180 = vpop.permute.xlu0 %2179
      %2181 = vrot.lane.b32.xlu0 %v1823, 127
      %v2182 = vpop.permute.xlu0 %2181
      %2183 = vrot.lane.b32.xlu0 %v1824, 127
      %v2184 = vpop.permute.xlu0 %2183
      %v2185 = vsel %vm260, %v2178, %v2180
      %v2186 = vsel %vm260, %v2180, %v2182
      %v2187 = vsel %vm260, %v2182, %v2184
      %2191 = vrot.lane.b32.xlu0 %v1821, 126
      %v2192 = vpop.permute.xlu0 %2191
      %2193 = vrot.lane.b32.xlu0 %v1822, 126
      %v2194 = vpop.permute.xlu0 %2193
      %2195 = vrot.lane.b32.xlu0 %v1823, 126
      %v2196 = vpop.permute.xlu0 %2195
      %2197 = vrot.lane.b32.xlu0 %v1824, 126
      %v2198 = vpop.permute.xlu0 %2197
      %v2199 = vsel %vm280, %v2192, %v2194
      %v2200 = vsel %vm280, %v2194, %v2196
      %v2201 = vsel %vm280, %v2196, %v2198
      %2205 = vrot.lane.b32.xlu0 %v1821, 104
      %v2206 = vpop.permute.xlu0 %2205
      %2207 = vrot.lane.b32.xlu0 %v1822, 104
      %v2208 = vpop.permute.xlu0 %2207
      %2209 = vrot.lane.b32.xlu0 %v1823, 104
      %v2210 = vpop.permute.xlu0 %2209
      %2211 = vrot.lane.b32.xlu0 %v1824, 104
      %v2212 = vpop.permute.xlu0 %2211
      %v2213 = vsel %vm300, %v2206, %v2208
      %v2214 = vsel %vm300, %v2208, %v2210
      %v2215 = vsel %vm300, %v2210, %v2212
      %2219 = vrot.lane.b32.xlu0 %v1821, 103
      %v2220 = vpop.permute.xlu0 %2219
      %2221 = vrot.lane.b32.xlu0 %v1822, 103
      %v2222 = vpop.permute.xlu0 %2221
      %2223 = vrot.lane.b32.xlu0 %v1823, 103
      %v2224 = vpop.permute.xlu0 %2223
      %2225 = vrot.lane.b32.xlu0 %v1824, 103
      %v2226 = vpop.permute.xlu0 %2225
      %v2227 = vsel %vm315, %v2220, %v2222
      %v2228 = vsel %vm315, %v2222, %v2224
      %v2229 = vsel %vm315, %v2224, %v2226
      %2233 = vrot.lane.b32.xlu0 %v1821, 102
      %v2234 = vpop.permute.xlu0 %2233
      %2235 = vrot.lane.b32.xlu0 %v1822, 102
      %v2236 = vpop.permute.xlu0 %2235
      %2237 = vrot.lane.b32.xlu0 %v1823, 102
      %v2238 = vpop.permute.xlu0 %2237
      %2239 = vrot.lane.b32.xlu0 %v1824, 102
      %v2240 = vpop.permute.xlu0 %2239
      %v2241 = vsel %vm335, %v2234, %v2236
      %v2242 = vsel %vm335, %v2236, %v2238
      %v2243 = vsel %vm335, %v2238, %v2240
      %2247 = vrot.lane.b32.xlu0 %v1821, 80
      %v2248 = vpop.permute.xlu0 %2247
      %2249 = vrot.lane.b32.xlu0 %v1822, 80
      %v2250 = vpop.permute.xlu0 %2249
      %2251 = vrot.lane.b32.xlu0 %v1823, 80
      %v2252 = vpop.permute.xlu0 %2251
      %2253 = vrot.lane.b32.xlu0 %v1824, 80
      %v2254 = vpop.permute.xlu0 %2253
      %v2255 = vsel %vm355, %v2248, %v2250
      %v2256 = vsel %vm355, %v2250, %v2252
      %v2257 = vsel %vm355, %v2252, %v2254
      %2261 = vrot.lane.b32.xlu0 %v1821, 79
      %v2262 = vpop.permute.xlu0 %2261
      %2263 = vrot.lane.b32.xlu0 %v1822, 79
      %v2264 = vpop.permute.xlu0 %2263
      %2265 = vrot.lane.b32.xlu0 %v1823, 79
      %v2266 = vpop.permute.xlu0 %2265
      %2267 = vrot.lane.b32.xlu0 %v1824, 79
      %v2268 = vpop.permute.xlu0 %2267
      %v2269 = vsel %vm375, %v2262, %v2264
      %v2270 = vsel %vm375, %v2264, %v2266
      %v2271 = vsel %vm375, %v2266, %v2268
      %2275 = vrot.lane.b32.xlu0 %v1821, 78
      %v2276 = vpop.permute.xlu0 %2275
      %2277 = vrot.lane.b32.xlu0 %v1822, 78
      %v2278 = vpop.permute.xlu0 %2277
      %2279 = vrot.lane.b32.xlu0 %v1823, 78
      %v2280 = vpop.permute.xlu0 %2279
      %2281 = vrot.lane.b32.xlu0 %v1824, 78
      %v2282 = vpop.permute.xlu0 %2281
      %v2283 = vsel %vm390, %v2276, %v2278
      %v2284 = vsel %vm390, %v2278, %v2280
      %v2285 = vsel %vm390, %v2280, %v2282
      %v2289 = vld [vmem:[%s3] sm:$0x3]
      %v2290 = vld [vmem:[%s4] sm:$0x3]
      %2292 = vset.pattern.permute.xlu0 0
      %2293 = vperm.xlu0 %2292, %v2290
      %v2294 = vpop.permute.xlu0 %2293
      %v2298 = vunpack.c.l.s4 1966171168
      %v2299 = vunpack.c.0.s8 %v2298
      %v2300 = vlaneseq
      %v2301 = vshrl.u32 %v2300, 7
      %v2302 = vsub.s32 %v2299, %v2301
      %v2303 = vrot.slane %v2289, %v2302
      %v2304 = vcombine.high %v2303, %v2303
      %v2306 = vunpack.c.l.s4 1966171168
      %v2307 = vunpack.c.0.s8 %v2306
      %v2308 = vlaneseq
      %v2309 = vshrl.u32 %v2308, 7
      %v2310 = vsub.s32 %v2307, %v2309
      %v2311 = vrot.slane %v2303, %v2310
      %v2313 = vunpack.c.l.s4 1966171168
      %v2314 = vunpack.c.0.s8 %v2313
      %v2315 = vlaneseq
      %v2316 = vshrl.u32 %v2315, 7
      %v2317 = vsub.s32 %v2314, %v2316
      %v2318 = vrot.slane %v2304, %v2317
      %vm2320 = vcmask 130048
      %v2322 = vsel %vm2320, %v2318, 0
      %2324 = vmatprep.subr.bf16.mxu0 %v1922
      %2325 = vmatpush1.bf16.msra.mxu0 %v1921
      %2326 = vmatprep.subr.bf16.mxu0 %v1908
      %2327 = vmatpush1.bf16.msra.mxu0 %v1907
      %2328 = vmatprep.subr.bf16.mxu0 %v1894
      %2329 = vmatpush1.bf16.msra.mxu0 %v1893
      %2330 = vmatprep.subr.bf16.mxu0 %v1880
      %2331 = vmatpush1.bf16.msra.mxu0 %v1879
      %2332 = vmatprep.subr.bf16.mxu0 %v1866
      %2333 = vmatpush1.bf16.msra.mxu0 %v1865
      %2334 = vmatprep.subr.bf16.mxu0 %v1852
      %2335 = vmatpush1.bf16.msra.mxu0 %v1851
      %2336 = vmatprep.subr.bf16.mxu0 %v1838
      %2337 = vmatpush1.bf16.msra.mxu0 %v1837
      %2338 = vmatprep.subr.bf16.mxu0 %v1810
      %2339 = vmatpush1.bf16.msra.mxu0 %v1809
      %2340 = vmatprep.subr.bf16.mxu0 0
      %2341 = vmatpush2.bf16.msra.mxu0 0
      %2342 = vmatprep.subr.bf16.mxu0 0
      %2343 = vmatpush2.bf16.msra.mxu0 0
      %2344 = vmatprep.subr.bf16.mxu0 0
      %2345 = vmatpush2.bf16.msra.mxu0 0
      %2346 = vmatprep.subr.bf16.mxu0 0
      %2347 = vmatpush2.bf16.msra.mxu0 0
      %2348 = vmatprep.subr.bf16.mxu0 0
      %2349 = vmatpush2.bf16.msra.mxu0 0
      %2350 = vmatprep.subr.bf16.mxu0 0
      %2351 = vmatpush2.bf16.msra.mxu0 0
      %2352 = vmatprep.subr.bf16.mxu0 0
      %2353 = vmatpush2.bf16.msra.mxu0 0
      %2354 = vmatprep.subr.bf16.mxu0 %v1936
      %2355 = vmatpush2.bf16.msra.mxu0 %v1935
      %2356 = vmatprep.mubr.bf16.mxu0 %v2322
      %2357 = vmatmul.mubr.bf16.gmra.mxu0 %v2311
      %v2358 = vpop.f32.mrf.mxu0
      %v2359 = vadd.f32 %v2294, %v2358
      %v2360 = vpop.f32.mrf.mxu0
      %v2361 = vadd.f32 %v2294, %v2360
      %v2362 = vpop.f32.mrf.mxu0
      %v2363 = vpop.f32.mrf.mxu0
      %2364 = vdwg.mxu0
      %2365 = vmatprep.subr.bf16.mxu0 %v2037
      %2366 = vmatpush1.bf16.msra.mxu0 %v1923
      %2367 = vmatprep.subr.bf16.mxu0 %v2023
      %2368 = vmatpush1.bf16.msra.mxu0 %v1909
      %2369 = vmatprep.subr.bf16.mxu0 %v2009
      %2370 = vmatpush1.bf16.msra.mxu0 %v1895
      %2371 = vmatprep.subr.bf16.mxu0 %v1995
      %2372 = vmatpush1.bf16.msra.mxu0 %v1881
      %2373 = vmatprep.subr.bf16.mxu0 %v1981
      %2374 = vmatpush1.bf16.msra.mxu0 %v1867
      %2375 = vmatprep.subr.bf16.mxu0 %v1967
      %2376 = vmatpush1.bf16.msra.mxu0 %v1853
      %2377 = vmatprep.subr.bf16.mxu0 %v1953
      %2378 = vmatpush1.bf16.msra.mxu0 %v1839
      %2379 = vmatprep.subr.bf16.mxu0 %v1813
      %2380 = vmatpush1.bf16.msra.mxu0 %v1811
      %2381 = vmatprep.subr.bf16.mxu0 0
      %2382 = vmatpush2.bf16.msra.mxu0 0
      %2383 = vmatprep.subr.bf16.mxu0 0
      %2384 = vmatpush2.bf16.msra.mxu0 0
      %2385 = vmatprep.subr.bf16.mxu0 0
      %2386 = vmatpush2.bf16.msra.mxu0 0
      %2387 = vmatprep.subr.bf16.mxu0 0
      %2388 = vmatpush2.bf16.msra.mxu0 0
      %2389 = vmatprep.subr.bf16.mxu0 0
      %2390 = vmatpush2.bf16.msra.mxu0 0
      %2391 = vmatprep.subr.bf16.mxu0 0
      %2392 = vmatpush2.bf16.msra.mxu0 0
      %2393 = vmatprep.subr.bf16.mxu0 0
      %2394 = vmatpush2.bf16.msra.mxu0 0
      %2395 = vmatprep.subr.bf16.mxu0 %v2051
      %2396 = vmatpush2.bf16.msra.mxu0 %v1937
      %2397 = vmatprep.mubr.bf16.mxu0 %v2322
      %2398 = vmatmul.mubr.bf16.gmra.mxu0 %v2311
      %v2399 = vpop.f32.mrf.mxu0
      %v2400 = vadd.f32 %v2294, %v2399
      %v2401 = vpop.f32.mrf.mxu0
      %v2402 = vadd.f32 %v2294, %v2401
      %v2403 = vpop.f32.mrf.mxu0
      %v2404 = vpop.f32.mrf.mxu0
      %2405 = vdwg.mxu0
      %2406 = vmatprep.subr.bf16.mxu0 %v2039
      %2407 = vmatpush1.bf16.msra.mxu0 %v2038
      %2408 = vmatprep.subr.bf16.mxu0 %v2025
      %2409 = vmatpush1.bf16.msra.mxu0 %v2024
      %2410 = vmatprep.subr.bf16.mxu0 %v2011
      %2411 = vmatpush1.bf16.msra.mxu0 %v2010
      %2412 = vmatprep.subr.bf16.mxu0 %v1997
      %2413 = vmatpush1.bf16.msra.mxu0 %v1996
      %2414 = vmatprep.subr.bf16.mxu0 %v1983
      %2415 = vmatpush1.bf16.msra.mxu0 %v1982
      %2416 = vmatprep.subr.bf16.mxu0 %v1969
      %2417 = vmatpush1.bf16.msra.mxu0 %v1968
      %2418 = vmatprep.subr.bf16.mxu0 %v1955
      %2419 = vmatpush1.bf16.msra.mxu0 %v1954
      %2420 = vmatprep.subr.bf16.mxu0 %v1815
      %2421 = vmatpush1.bf16.msra.mxu0 %v1814
      %2422 = vmatprep.subr.bf16.mxu0 0
      %2423 = vmatpush2.bf16.msra.mxu0 0
      %2424 = vmatprep.subr.bf16.mxu0 0
      %2425 = vmatpush2.bf16.msra.mxu0 0
      %2426 = vmatprep.subr.bf16.mxu0 0
      %2427 = vmatpush2.bf16.msra.mxu0 0
      %2428 = vmatprep.subr.bf16.mxu0 0
      %2429 = vmatpush2.bf16.msra.mxu0 0
      %2430 = vmatprep.subr.bf16.mxu0 0
      %2431 = vmatpush2.bf16.msra.mxu0 0
      %2432 = vmatprep.subr.bf16.mxu0 0
      %2433 = vmatpush2.bf16.msra.mxu0 0
      %2434 = vmatprep.subr.bf16.mxu0 0
      %2435 = vmatpush2.bf16.msra.mxu0 0
      %2436 = vmatprep.subr.bf16.mxu0 %v2053
      %2437 = vmatpush2.bf16.msra.mxu0 %v2052
      %2438 = vmatprep.mubr.bf16.mxu0 %v2322
      %2439 = vmatmul.mubr.bf16.gmra.mxu0 %v2311
      %v2440 = vpop.f32.mrf.mxu0
      %v2441 = vadd.f32 %v2294, %v2440
      %v2442 = vpop.f32.mrf.mxu0
      %v2443 = vadd.f32 %v2294, %v2442
      %v2444 = vpop.f32.mrf.mxu0
      %v2445 = vpop.f32.mrf.mxu0
      %2446 = vdwg.mxu0
      %2447 = vmatprep.subr.bf16.mxu0 %v2154
      %2448 = vmatpush1.bf16.msra.mxu0 %v2153
      %2449 = vmatprep.subr.bf16.mxu0 %v2140
      %2450 = vmatpush1.bf16.msra.mxu0 %v2139
      %2451 = vmatprep.subr.bf16.mxu0 %v2126
      %2452 = vmatpush1.bf16.msra.mxu0 %v2125
      %2453 = vmatprep.subr.bf16.mxu0 %v2112
      %2454 = vmatpush1.bf16.msra.mxu0 %v2111
      %2455 = vmatprep.subr.bf16.mxu0 %v2098
      %2456 = vmatpush1.bf16.msra.mxu0 %v2097
      %2457 = vmatprep.subr.bf16.mxu0 %v2084
      %2458 = vmatpush1.bf16.msra.mxu0 %v2083
      %2459 = vmatprep.subr.bf16.mxu0 %v2070
      %2460 = vmatpush1.bf16.msra.mxu0 %v2069
      %2461 = vmatprep.subr.bf16.mxu0 %v1818
      %2462 = vmatpush1.bf16.msra.mxu0 %v1817
      %2463 = vmatprep.subr.bf16.mxu0 0
      %2464 = vmatpush2.bf16.msra.mxu0 0
      %2465 = vmatprep.subr.bf16.mxu0 0
      %2466 = vmatpush2.bf16.msra.mxu0 0
      %2467 = vmatprep.subr.bf16.mxu0 0
      %2468 = vmatpush2.bf16.msra.mxu0 0
      %2469 = vmatprep.subr.bf16.mxu0 0
      %2470 = vmatpush2.bf16.msra.mxu0 0
      %2471 = vmatprep.subr.bf16.mxu0 0
      %2472 = vmatpush2.bf16.msra.mxu0 0
      %2473 = vmatprep.subr.bf16.mxu0 0
      %2474 = vmatpush2.bf16.msra.mxu0 0
      %2475 = vmatprep.subr.bf16.mxu0 0
      %2476 = vmatpush2.bf16.msra.mxu0 0
      %2477 = vmatprep.subr.bf16.mxu0 %v2168
      %2478 = vmatpush2.bf16.msra.mxu0 %v2167
      %2479 = vmatprep.mubr.bf16.mxu0 %v2322
      %2480 = vmatmul.mubr.bf16.gmra.mxu0 %v2311
      %v2481 = vpop.f32.mrf.mxu0
      %v2482 = vadd.f32 %v2294, %v2481
      %v2483 = vpop.f32.mrf.mxu0
      %v2484 = vadd.f32 %v2294, %v2483
      %v2485 = vpop.f32.mrf.mxu0
      %v2486 = vpop.f32.mrf.mxu0
      %2487 = vdwg.mxu0
      %2488 = vmatprep.subr.bf16.mxu0 %v2269
      %2489 = vmatpush1.bf16.msra.mxu0 %v2155
      %2490 = vmatprep.subr.bf16.mxu0 %v2255
      %2491 = vmatpush1.bf16.msra.mxu0 %v2141
      %2492 = vmatprep.subr.bf16.mxu0 %v2241
      %2493 = vmatpush1.bf16.msra.mxu0 %v2127
      %2494 = vmatprep.subr.bf16.mxu0 %v2227
      %2495 = vmatpush1.bf16.msra.mxu0 %v2113
      %2496 = vmatprep.subr.bf16.mxu0 %v2213
      %2497 = vmatpush1.bf16.msra.mxu0 %v2099
      %2498 = vmatprep.subr.bf16.mxu0 %v2199
      %2499 = vmatpush1.bf16.msra.mxu0 %v2085
      %2500 = vmatprep.subr.bf16.mxu0 %v2185
      %2501 = vmatpush1.bf16.msra.mxu0 %v2071
      %2502 = vmatprep.subr.bf16.mxu0 %v1821
      %2503 = vmatpush1.bf16.msra.mxu0 %v1819
      %2504 = vmatprep.subr.bf16.mxu0 0
      %2505 = vmatpush2.bf16.msra.mxu0 0
      %2506 = vmatprep.subr.bf16.mxu0 0
      %2507 = vmatpush2.bf16.msra.mxu0 0
      %2508 = vmatprep.subr.bf16.mxu0 0
      %2509 = vmatpush2.bf16.msra.mxu0 0
      %2510 = vmatprep.subr.bf16.mxu0 0
      %2511 = vmatpush2.bf16.msra.mxu0 0
      %2512 = vmatprep.subr.bf16.mxu0 0
      %2513 = vmatpush2.bf16.msra.mxu0 0
      %2514 = vmatprep.subr.bf16.mxu0 0
      %2515 = vmatpush2.bf16.msra.mxu0 0
      %2516 = vmatprep.subr.bf16.mxu0 0
      %2517 = vmatpush2.bf16.msra.mxu0 0
      %2518 = vmatprep.subr.bf16.mxu0 %v2283
      %2519 = vmatpush2.bf16.msra.mxu0 %v2169
      %2520 = vmatprep.mubr.bf16.mxu0 %v2322
      %2521 = vmatmul.mubr.bf16.gmra.mxu0 %v2311
      %v2522 = vpop.f32.mrf.mxu0
      %v2523 = vadd.f32 %v2294, %v2522
      %v2524 = vpop.f32.mrf.mxu0
      %v2525 = vadd.f32 %v2294, %v2524
      %v2526 = vpop.f32.mrf.mxu0
      %v2527 = vpop.f32.mrf.mxu0
      %2528 = vdwg.mxu0
      %2529 = vmatprep.subr.bf16.mxu0 %v2271
      %2530 = vmatpush1.bf16.msra.mxu0 %v2270
      %2531 = vmatprep.subr.bf16.mxu0 %v2257
      %2532 = vmatpush1.bf16.msra.mxu0 %v2256
      %2533 = vmatprep.subr.bf16.mxu0 %v2243
      %2534 = vmatpush1.bf16.msra.mxu0 %v2242
      %2535 = vmatprep.subr.bf16.mxu0 %v2229
      %2536 = vmatpush1.bf16.msra.mxu0 %v2228
      %2537 = vmatprep.subr.bf16.mxu0 %v2215
      %2538 = vmatpush1.bf16.msra.mxu0 %v2214
      %2539 = vmatprep.subr.bf16.mxu0 %v2201
      %2540 = vmatpush1.bf16.msra.mxu0 %v2200
      %2541 = vmatprep.subr.bf16.mxu0 %v2187
      %2542 = vmatpush1.bf16.msra.mxu0 %v2186
      %2543 = vmatprep.subr.bf16.mxu0 %v1823
      %2544 = vmatpush1.bf16.msra.mxu0 %v1822
      %2545 = vmatprep.subr.bf16.mxu0 0
      %2546 = vmatpush2.bf16.msra.mxu0 0
      %2547 = vmatprep.subr.bf16.mxu0 0
      %2548 = vmatpush2.bf16.msra.mxu0 0
      %2549 = vmatprep.subr.bf16.mxu0 0
      %2550 = vmatpush2.bf16.msra.mxu0 0
      %2551 = vmatprep.subr.bf16.mxu0 0
      %2552 = vmatpush2.bf16.msra.mxu0 0
      %2553 = vmatprep.subr.bf16.mxu0 0
      %2554 = vmatpush2.bf16.msra.mxu0 0
      %2555 = vmatprep.subr.bf16.mxu0 0
      %2556 = vmatpush2.bf16.msra.mxu0 0
      %2557 = vmatprep.subr.bf16.mxu0 0
      %2558 = vmatpush2.bf16.msra.mxu0 0
      %2559 = vmatprep.subr.bf16.mxu0 %v2285
      %2560 = vmatpush2.bf16.msra.mxu0 %v2284
      %2561 = vmatprep.mubr.bf16.mxu0 %v2322
      %2562 = vmatmul.mubr.bf16.gmra.mxu0 %v2311
      %v2563 = vpop.f32.mrf.mxu0
      %v2564 = vadd.f32 %v2294, %v2563
      %v2565 = vpop.f32.mrf.mxu0
      %v2566 = vadd.f32 %v2294, %v2565
      %v2567 = vpop.f32.mrf.mxu0
      %v2568 = vpop.f32.mrf.mxu0
      %2569 = vdwg.mxu0
      %v2582 = vcombine.low %v2359, %v2361
      %v2583 = vcombine.low %v2400, %v2402
      %v2585 = vunpack.c.l.s4 1983009808
      %v2586 = vunpack.c.0.s8 %v2585
      %v2587 = vlaneseq
      %v2588 = vshrl.u32 %v2587, 7
      %v2589 = vsub.s32 %v2586, %v2588
      %v2590 = vrot.slane %v2582, %v2589
      %v2592 = vunpack.c.l.s4 1983009808
      %v2593 = vunpack.c.0.s8 %v2592
      %v2594 = vlaneseq
      %v2595 = vshrl.u32 %v2594, 7
      %v2596 = vsub.s32 %v2593, %v2595
      %v2597 = vrot.slane %v2583, %v2596
      %v2598 = vcombine.low %v2590, %v2597
      %v2599 = vcombine.low %v2441, %v2443
      %v2600 = vcombine.low %v2482, %v2484
      %v2602 = vunpack.c.l.s4 1983009808
      %v2603 = vunpack.c.0.s8 %v2602
      %v2604 = vlaneseq
      %v2605 = vshrl.u32 %v2604, 7
      %v2606 = vsub.s32 %v2603, %v2605
      %v2607 = vrot.slane %v2599, %v2606
      %v2609 = vunpack.c.l.s4 1983009808
      %v2610 = vunpack.c.0.s8 %v2609
      %v2611 = vlaneseq
      %v2612 = vshrl.u32 %v2611, 7
      %v2613 = vsub.s32 %v2610, %v2612
      %v2614 = vrot.slane %v2600, %v2613
      %v2615 = vcombine.low %v2607, %v2614
      %v2616 = vcombine.low %v2523, %v2525
      %v2617 = vcombine.low %v2564, %v2566
      %v2619 = vunpack.c.l.s4 1983009808
      %v2620 = vunpack.c.0.s8 %v2619
      %v2621 = vlaneseq
      %v2622 = vshrl.u32 %v2621, 7
      %v2623 = vsub.s32 %v2620, %v2622
      %v2624 = vrot.slane %v2616, %v2623
      %v2626 = vunpack.c.l.s4 1983009808
      %v2627 = vunpack.c.0.s8 %v2626
      %v2628 = vlaneseq
      %v2629 = vshrl.u32 %v2628, 7
      %v2630 = vsub.s32 %v2627, %v2629
      %v2631 = vrot.slane %v2617, %v2630
      %v2632 = vcombine.low %v2624, %v2631
      %2636 = vst [vmem:[%s224] sm:$0xff] %v2598
      %2637 = vst [vmem:[%s224 + $0x8] sm:$0xff] %v2615
      %2638 = vst [vmem:[%s224 + $0x10] sm:$0xff] %v2632
      %p2639 = scmp.lt.s32.totalorder %s16, 1
      %s2640 = scalar_select %p2639, %s16, 1
      %s2641 = smul.addr %s2640, 12
      %s2642 = smul.addr %s2641, 2
      %s2643 = scalar_lea.vmem %s5, %s2642
      // Predicated region
      $region41: #{eval_flow.1} parent=39 // pred_check
        %p2644 = pneg %p144
      $region42: #{eval_flow.1} parent=39 // pred_check_branch
        %2646 = sbr.rel (%p2644) target = $region44
      $region43: #{eval_flow.1} parent=39 // pred_region
        _
      $region44: #{eval_flow.1} parent=39 // pred_fallthru
        _
    $region40: #{eval_flow.1} parent=5 // pred_fallthru
      _
    %p2647 = scmp.le.s32.totalorder 2, %s11
    // Predicated region
    $region45: #{eval_flow.1} parent=5 // pred_check
      %p2648 = pneg %p2647
    $region46: #{eval_flow.1} parent=5 // pred_check_branch
      %2650 = sbr.rel (%p2648) target = $region48
    $region47: #{eval_flow.1} parent=5 // pred_region
      %s2651 = ssub.s32 %s11, 2
      // Predicated region
      $region49: #{eval_flow.1} parent=47 // pred_check
        %p2652 = pneg %p150
      $region50: #{eval_flow.1} parent=47 // pred_check_branch
        %2654 = sbr.rel (%p2652) target = $region52
      $region51: #{eval_flow.1} parent=47 // pred_region
        %p2655 = scmp.lt.s32.totalorder %s17, 1
        %s2656 = scalar_select %p2655, %s17, 1
        %s2657 = smul.addr %s2656, 12
        %s2658 = smul.addr %s2657, 2
        %s2659 = scalar_lea.vmem %s5, %s2658
      $region52: #{eval_flow.1} parent=47 // pred_fallthru
        _
    $region48: #{eval_flow.1} parent=5 // pred_fallthru
      _
  $region6: #{eval_flow.1} parent=0 // loop_footer
    %s15 = sadd.s32 1, %s11
  $region7: #{eval_flow.1} parent=0 // loop_footer_branch
    %10 = sbr.rel target = $region3
  $region8: #{eval_flow.1} parent=0 // loop_exit
    _

</llo_original>
